<compile_context>
chip_gen: v5e
topology: v5e:2x2
jax: 0.10.0
libtpu: 0.0.40
codegen_flags: <defaults>
</compile_context>

<pallas_src>
import numpy as np
import jax
import jax.numpy as jnp
from jax import lax
from jax.experimental import pallas as pl
from jax.experimental.pallas import tpu as pltpu

# ----------------------------- hyper-parameters (GSSM_v5(dim=32, ...)) ------------------
DIM      = 32                   # d_model
EXPAND   = 2
D_INNER  = EXPAND * DIM         # 64
D_STATE  = 16
D_CONV   = 4
DT_RANK  = (DIM + 15) // 16     # ceil(dim/16) = 2
SD       = D_STATE * D_INNER    # 1024 (flattened state width)
XPROJ_N  = 2 * D_INNER + 2 * SD # 2176 = 17 * 128 (lane-dense fused x_proj width)
NORM_EPS = 1e-5                 # norm_epsilon (RMSNorm inside the Mamba block)
LN_EPS   = 1e-5                 # nn.LayerNorm eps used by layernorm_fn
PADR     = 8                    # sublane-aligned left padding for the causal conv scratch


# ======================================================================================
# Kernel 1: Sparse1ConvBlock  (submanifold 3x3x3 conv -> LayerNorm -> +identity -> ReLU)
#           tiled over voxel rows; nbr/weights in bf16, norm/ReLU in f32.
# ======================================================================================
def _sparse_conv_block_kernel(nbr_ref, x_ref, w_ref, g_ref, b_ref, out_ref):
    y = jnp.dot(nbr_ref[...], w_ref[...], preferred_element_type=jnp.float32)  # (TM, C) f32
    mu = jnp.mean(y, axis=-1, keepdims=True)
    var = jnp.mean(jnp.square(y - mu), axis=-1, keepdims=True)
    yn = (y - mu) * lax.rsqrt(var + LN_EPS) * g_ref[...] + b_ref[...]
    out_ref[...] = jnp.maximum(yn + x_ref[...], 0.0)


def sparse_conv_block(nbr, x, w, g, b, tm):
    n, kc = nbr.shape
    c = x.shape[1]
    return pl.pallas_call(
        _sparse_conv_block_kernel,
        out_shape=jax.ShapeDtypeStruct((n, c), jnp.float32),
        grid=(n // tm,),
        in_specs=[
            pl.BlockSpec((tm, kc), lambda i: (i, 0)),   # gathered neighbors (bf16)
            pl.BlockSpec((tm, c), lambda i: (i, 0)),    # identity features (f32)
            pl.BlockSpec((kc, c), lambda i: (0, 0)),    # conv weight (bf16)
            pl.BlockSpec((1, c), lambda i: (0, 0)),     # LN gamma
            pl.BlockSpec((1, c), lambda i: (0, 0)),     # LN beta
        ],
        out_specs=pl.BlockSpec((tm, c), lambda i: (i, 0)),
        compiler_params=pltpu.CompilerParams(dimension_semantics=("parallel",)),
    )(nbr, x, w, g, b)


# ======================================================================================
# Kernel 2: fused Mamba block (pre-RMSNorm -> fused in_proj -> vectorized causal conv1d
#           -> SiLU -> fused x_proj -> softplus dt -> vectorized selective scan ->
#           SiLU(z) gate -> out_proj) + trailing ssm_forward_norm LayerNorm.
#           One grid step per batch element; whole padded sequence resident in VMEM.
# ======================================================================================
def _mamba_block_kernel(seq_ref, rmsw_ref, win_ref, cw_ref, cb_ref,
                        wxp_ref, bdt_ref, aflat_ref, dpar_ref, wout_ref,
                        lng_ref, lnb_ref,
                        out_ref,
                        xpad_scr, da_scr, term_scr, h_scr):
    L = da_scr.shape[0]
    Di = D_INNER

    u = seq_ref[0]                                                     # (L, Dm)

    # ---- pre-norm (RMSNorm) ----
    un = u * lax.rsqrt(jnp.mean(u * u, axis=-1, keepdims=True) + NORM_EPS)
    un = un * rmsw_ref[...]

    # ---- fused in_proj (bias-free): one lane-dense (Dm, 2*Di) matmul ----
    xz = jnp.dot(un, win_ref[...], preferred_element_type=jnp.float32)  # (L, 128)
    x_in = xz[:, :Di]                                                   # (L, 64)
    z = xz[:, Di:]                                                      # (L, 64)

    # ---- causal depthwise conv1d: left-padded scratch + 4 shifted full-tile FMAs ----
    xpad_scr[0:PADR, :] = jnp.zeros((PADR, Di), jnp.float32)
    xpad_scr[PADR:PADR + L, :] = x_in
    cw = cw_ref[...]                                                    # (D_CONV, Di)
    xc = cb_ref[...] + x_in * cw[D_CONV - 1:D_CONV, :]                  # tap k=0
    for k in range(1, D_CONV):                                          # taps read x_in[t-k]
        xc = xc + xpad_scr[PADR - k:PADR - k + L, :] * cw[D_CONV - 1 - k:D_CONV - k, :]
    x_act = xc * jax.nn.sigmoid(xc)                                     # SiLU, (L, Di)

    # ---- fused x_proj: [dt (64) | pad (64) | B expanded (1024) | C expanded (1024)] ----
    big = jnp.dot(x_act, wxp_ref[...], preferred_element_type=jnp.float32)  # (L, 2176)
    dt_pre = big[:, :Di] + bdt_ref[...]
    dt_sp = jnp.maximum(dt_pre, 0.0) + jnp.log(1.0 + jnp.exp(-jnp.abs(dt_pre)))  # softplus
    b_exp = big[:, 2 * Di:2 * Di + SD]                                  # B[t,s] at lane s*Di+d
    c_exp = big[:, 2 * Di + SD:2 * Di + 2 * SD]                         # C[t,s] at lane s*Di+d

    g = dt_sp * x_act                                                   # (L, Di)
    dt_rep = jnp.concatenate([dt_sp] * D_STATE, axis=-1)                # (L, SD)
    g_rep = jnp.concatenate([g] * D_STATE, axis=-1)                     # (L, SD)

    # ---- precompute the scan coefficients as dense (L, 1024) tiles ----
    da_scr[...] = jnp.exp(dt_rep * aflat_ref[...])                      # exp(dt * A)
    term_scr[...] = g_rep * b_exp                                       # (dt * x) outer B

    # ---- selective scan: single fori_loop over L, flattened (1, 1024) state ----
    def scan_body(t, h):
        h = da_scr[pl.ds(t, 1), :] * h + term_scr[pl.ds(t, 1), :]
        h_scr[pl.ds(t, 1), :] = h
        return h

    lax.fori_loop(0, L, scan_body, jnp.zeros((1, SD), jnp.float32))

    # ---- y[t,d] = sum_s C[t,s] * h[t,s,d] : elementwise product + lane-chunk fold ----
    prod = c_exp * h_scr[...]                                           # (L, SD)
    acc = prod[:, 0:128]
    for j in range(1, SD // 128):
        acc = acc + prod[:, 128 * j:128 * (j + 1)]                      # fold 128-wide tiles
    y = acc[:, :Di] + acc[:, Di:]                                       # fold the two 64-halves

    # ---- D skip, gate, output projection ----
    y = y + x_act * dpar_ref[...]
    y = y * (z * jax.nn.sigmoid(z))
    o = jnp.dot(y, wout_ref[...], preferred_element_type=jnp.float32)   # (L, Dm)

    # ---- ssm_forward_norm: LayerNorm(d_model), per-row so fused here pre-scatter ----
    mu = jnp.mean(o, axis=-1, keepdims=True)
    var = jnp.mean(jnp.square(o - mu), axis=-1, keepdims=True)
    out_ref[0] = (o - mu) * lax.rsqrt(var + LN_EPS) * lng_ref[...] + lnb_ref[...]


def mamba_ssm_block(seqs, pp):
    B, L, Dm = seqs.shape
    Di = D_INNER

    def wspec(shape):
        return pl.BlockSpec(shape, lambda b: (0, 0))

    return pl.pallas_call(
        _mamba_block_kernel,
        out_shape=jax.ShapeDtypeStruct((B, L, Dm), jnp.float32),
        grid=(B,),
        in_specs=[
            pl.BlockSpec((1, L, Dm), lambda b: (b, 0, 0)),   # this batch's sequence
            wspec((1, Dm)),              # RMSNorm weight
            wspec((Dm, 2 * Di)),         # fused in_proj [x | z]   (32, 128)
            wspec((D_CONV, Di)),         # depthwise conv weight
            wspec((1, Di)),              # depthwise conv bias
            wspec((Di, XPROJ_N)),        # fused x_proj [dt | pad | B-exp | C-exp] (64, 2176)
            wspec((1, Di)),              # dt_proj bias
            wspec((1, SD)),              # A = -exp(A_log), flattened (s*Di+d)
            wspec((1, Di)),              # D skip
            wspec((Di, Dm)),             # out_proj
            wspec((1, Dm)),              # ssm_forward_norm gamma
            wspec((1, Dm)),              # ssm_forward_norm beta
        ],
        out_specs=pl.BlockSpec((1, L, Dm), lambda b: (b, 0, 0)),
        scratch_shapes=[
            pltpu.VMEM((L + PADR, Di), jnp.float32),   # left-padded conv input
            pltpu.VMEM((L, SD), jnp.float32),          # exp(dt*A)
            pltpu.VMEM((L, SD), jnp.float32),          # (dt*x) outer B
            pltpu.VMEM((L, SD), jnp.float32),          # all hidden states
        ],
        compiler_params=pltpu.CompilerParams(dimension_semantics=("parallel",)),
    )(seqs, pp['rms_w'], pp['w_in'], pp['conv_w'], pp['conv_b'],
      pp['w_xproj'], pp['bdt'], pp['a_flat'], pp['d_skip'], pp['wout'],
      pp['ln_g'], pp['ln_b'])


# ======================================================================================
# Host-side index prep (numpy) + device-side gathers (no host round-trips between kernels)
# ======================================================================================
def _neighbor_indices(coords_np, spatial_shape, batch_size, n):
    D, H, W = spatial_shape
    vol = -np.ones((batch_size, D, H, W), np.int64)
    vol[coords_np[:, 0], coords_np[:, 1], coords_np[:, 2], coords_np[:, 3]] = np.arange(n)
    nbr_idx = np.full((n, 27), n, np.int32)            # index n -> zero row (missing neighbor)
    k = 0
    for dz in (-1, 0, 1):
        for dy in (-1, 0, 1):
            for dx in (-1, 0, 1):
                zz = coords_np[:, 1] + dz
                yy = coords_np[:, 2] + dy
                xx = coords_np[:, 3] + dx
                ok = (zz >= 0) & (zz < D) & (yy >= 0) & (yy < H) & (xx >= 0) & (xx < W)
                got = vol[coords_np[:, 0], np.clip(zz, 0, D - 1),
                          np.clip(yy, 0, H - 1), np.clip(xx, 0, W - 1)]
                nbr_idx[:, k] = np.where(ok & (got >= 0), got, n).astype(np.int32)
                k += 1
    return nbr_idx


def _expand_bits(v):
    v = v.astype(np.int64)
    out = np.zeros_like(v)
    for b in range(10):
        out |= ((v >> b) & 1) << (3 * b)
    return out


def _morton_code(z, y, x, primary_axis='x'):
    # TODO(synk): approximation of get_morton_index_3d (exact bit layout of the original
    #             z-order variant is not public); it only defines a permutation.
    if primary_axis == 'x':
        return (_expand_bits(x) << 0) | (_expand_bits(y) << 1) | (_expand_bits(z) << 2)
    return (_expand_bits(y) << 0) | (_expand_bits(x) << 1) | (_expand_bits(z) << 2)


def gssm_v5_forward(feats, coords, spatial_shape, batch_size, params,
                    scan_primary_axis='x', num_stage=0):
    coords_np = np.asarray(coords)
    N, C = feats.shape

    # ---- self_modeling_blocks: Sparse1ConvBlock (Pallas kernel 1, bf16 inputs) ----
    nbr_idx = _neighbor_indices(coords_np, spatial_shape, batch_size, N)
    feats_bf = feats.astype(jnp.bfloat16)
    feats_ext = jnp.concatenate([feats_bf, jnp.zeros((1, C), jnp.bfloat16)], axis=0)
    nbr = feats_ext[jnp.asarray(nbr_idx)].reshape(N, 27 * C)            # device gather, bf16

    tm = min(1024, ((N + 255) // 256) * 256)                            # row tile (mult of 256)
    n_pad = ((N + tm - 1) // tm) * tm
    nbr_p = jnp.pad(nbr, ((0, n_pad - N), (0, 0)))
    x_p = jnp.pad(feats, ((0, n_pad - N), (0, 0)))
    feats = sparse_conv_block(nbr_p, x_p, params['conv3d_w_bf16'],
                              params['conv3d_g'], params['conv3d_b'], tm)[:N]

    # ---- positional embedding (window_pos_embed == False path) ----
    pe = jnp.asarray(coords_np[:, 1:], jnp.float32) @ params['pe_w'] + params['pe_b']
    feats = feats + pe

    # ---- z-order reorder per batch: index prep on host, gather/pack on device ----
    shift = num_stage
    orders, lens = [], []
    max_len = 0
    for b in range(batch_size):
        idx = np.nonzero(coords_np[:, 0] == b)[0]
        code = _morton_code(coords_np[idx, 1] + shift, coords_np[idx, 2] + shift,
                            coords_np[idx, 3] + shift, scan_primary_axis)
        order = np.argsort(code, kind='stable')
        orders.append(idx[order])
        lens.append(len(idx))
        max_len = max(max_len, len(idx))
    L = int(-(-max_len // 8) * 8)
    pack_idx = np.full((batch_size, L), N, np.int32)        # sentinel N -> zero row (padding)
    unpack_idx = np.zeros((N,), np.int32)
    for b in range(batch_size):
        pack_idx[b, :lens[b]] = orders[b]
        unpack_idx[orders[b]] = (b * L + np.arange(lens[b])).astype(np.int32)

    feats_ext2 = jnp.concatenate([feats, jnp.zeros((1, C), jnp.float32)], axis=0)
    seqs = feats_ext2[jnp.asarray(pack_idx)]                 # (B, L, C) device gather

    # ---- Mamba block + fused ssm_forward_norm (Pallas kernel 2) ----
    out_seq = mamba_ssm_block(seqs, params)

    # ---- scatter back to original voxel order (device gather) ----
    out = out_seq.reshape(batch_size * L, C)[jnp.asarray(unpack_idx)]
    return out


# ======================================================================================
# Deterministic parameter initialization + kernel-ready weight packing
# ======================================================================================
def init_params(key):
    ks = jax.random.split(key, 12)
    p = {}
    # Sparse1ConvBlock: SubMConv3d(dim, dim, 3, bias=False) + LayerNorm affine
    p['conv3d_w'] = jax.random.normal(ks[0], (27 * DIM, DIM), jnp.float32) * np.sqrt(2.0 / (27 * DIM))
    p['conv3d_g'] = jnp.ones((1, DIM), jnp.float32)
    p['conv3d_b'] = jnp.zeros((1, DIM), jnp.float32)
    # pos_embed stand-in (the original takes an external module): Linear(3 -> dim)
    p['pe_w'] = jax.random.normal(ks[1], (3, DIM), jnp.float32) * 0.1
    p['pe_b'] = jax.random.normal(ks[2], (1, DIM), jnp.float32) * 0.01
    # Mamba block (create_block(d_model=dim, rms_norm=True, ...))
    p['rms_w'] = jnp.ones((1, DIM), jnp.float32)
    p['win_x'] = jax.random.normal(ks[3], (DIM, D_INNER), jnp.float32) * 0.02
    p['win_z'] = jax.random.normal(ks[4], (DIM, D_INNER), jnp.float32) * 0.02
    p['conv_w'] = jax.random.normal(ks[5], (D_CONV, D_INNER), jnp.float32) * (1.0 / np.sqrt(D_CONV))
    p['conv_b'] = jnp.zeros((1, D_INNER), jnp.float32)
    p['wx_dt'] = jax.random.normal(ks[6], (D_INNER, DT_RANK), jnp.float32) * 0.02
    p['wx_b'] = jax.random.normal(ks[7], (D_INNER, D_STATE), jnp.float32) * 0.02
    p['wx_c'] = jax.random.normal(ks[8], (D_INNER, D_STATE), jnp.float32) * 0.02
    p['wdt'] = jax.random.normal(ks[9], (DT_RANK, D_INNER), jnp.float32) * (DT_RANK ** -0.5)
    dt_init = jnp.exp(jax.random.uniform(ks[10], (1, D_INNER), jnp.float32,
                                         minval=float(np.log(1e-3)), maxval=float(np.log(1e-1))))
    p['bdt'] = jnp.log(jnp.expm1(dt_init))                          # inverse softplus
    a = jnp.tile(jnp.arange(1, D_STATE + 1, dtype=jnp.float32)[:, None], (1, D_INNER))
    p['a_logT'] = jnp.log(a)                                        # (d_state, d_inner)
    p['d_skip'] = jnp.ones((1, D_INNER), jnp.float32)
    p['wout'] = jax.random.normal(ks[11], (D_INNER, DIM), jnp.float32) * 0.02
    p['ln_g'] = jnp.ones((1, DIM), jnp.float32)
    p['ln_b'] = jnp.zeros((1, DIM), jnp.float32)
    return p


def pack_params(p):
    """Fold/fuse weights into the lane-dense layouts the kernels consume."""
    pp = dict(p)
    pp['conv3d_w_bf16'] = p['conv3d_w'].astype(jnp.bfloat16)
    # fused in_proj: [x branch | z branch]  -> (Dm, 2*Di) = (32, 128)
    pp['w_in'] = jnp.concatenate([p['win_x'], p['win_z']], axis=1)
    # fused x_proj:  dt (low-rank folded) | 64-lane pad | B expanded | C expanded
    s_exp = jnp.kron(jnp.eye(D_STATE, dtype=jnp.float32),
                     jnp.ones((1, D_INNER), jnp.float32))           # (16, 1024)
    w_dt = p['wx_dt'] @ p['wdt']                                    # (Di, Di)
    pp['w_xproj'] = jnp.concatenate(
        [w_dt, jnp.zeros((D_INNER, D_INNER), jnp.float32),
         p['wx_b'] @ s_exp, p['wx_c'] @ s_exp], axis=1)             # (Di, 2176)
    # A = -exp(A_log), flattened so lane index = s*Di + d
    pp['a_flat'] = (-jnp.exp(p['a_logT'])).reshape(1, SD)           # (1, 1024)
    return pp


# ======================================================================================
if __name__ == "__main__":
    key = jax.random.PRNGKey(0)
    kc_, kf, kp = jax.random.split(key, 3)

    batch_size = 2
    spatial_shape = (8, 16, 16)        # (D, H, W); coords rows are (batch, z, y, x)
    counts = [48, 40]
    D, H, W = spatial_shape

    coords_list = []
    for b in range(batch_size):
        kb = jax.random.fold_in(kc_, b)
        lin = np.asarray(jax.random.choice(kb, D * H * W, shape=(counts[b],), replace=False))
        z = lin // (H * W)
        y = (lin // W) % H
        x = lin % W
        coords_list.append(np.stack([np.full(counts[b], b), z, y, x], axis=1).astype(np.int32))
    coords = np.concatenate(coords_list, axis=0)
    N = coords.shape[0]

    feats = jax.random.normal(kf, (N, DIM), jnp.float32)
    params = pack_params(init_params(kp))

    out = gssm_v5_forward(feats, coords, spatial_shape, batch_size, params,
                          scan_primary_axis='x', num_stage=0)
    jax.block_until_ready(out)
    assert out.shape == (N, DIM)
    assert bool(jnp.all(jnp.isfinite(out)))
    print("KERNEL_OK")
</pallas_src>

<mosaic_0001>
module attributes {stable_mosaic.version = 11 : i64} {
  func.func @_sparse_conv_block_kernel(%arg0: i32, %arg1: memref<256x864xbf16, #tpu.memory_space<vmem>>, %arg2: memref<256x32xf32, #tpu.memory_space<vmem>>, %arg3: memref<864x32xbf16, #tpu.memory_space<vmem>>, %arg4: memref<1x32xf32, #tpu.memory_space<vmem>>, %arg5: memref<1x32xf32, #tpu.memory_space<vmem>>, %arg6: memref<256x32xf32, #tpu.memory_space<vmem>>) attributes {dimension_semantics = [#tpu.dimension_semantics<parallel>], iteration_bounds = array<i64: 1>, scalar_prefetch = 0 : i64, scratch_operands = 0 : i64, tpu.core_type = #tpu.core_type<tc>, window_params = [{transform_indices = @transform_0, window_bounds = array<i64: 256, 864>}, {transform_indices = @transform_1, window_bounds = array<i64: 256, 32>}, {pipeline_mode = #tpu.pipeline_mode<synchronous>, transform_indices = @transform_2, window_bounds = array<i64: 864, 32>}, {pipeline_mode = #tpu.pipeline_mode<synchronous>, transform_indices = @transform_3, window_bounds = array<i64: 1, 32>}, {pipeline_mode = #tpu.pipeline_mode<synchronous>, transform_indices = @transform_4, window_bounds = array<i64: 1, 32>}, {transform_indices = @transform_5, window_bounds = array<i64: 256, 32>}]} {
    %c0 = arith.constant 0 : index
    %c0_0 = arith.constant 0 : index
    %0 = vector.load %arg1[%c0, %c0_0] : memref<256x864xbf16, #tpu.memory_space<vmem>>, vector<256x864xbf16>
    %c0_1 = arith.constant 0 : index
    %c0_2 = arith.constant 0 : index
    %1 = vector.load %arg3[%c0_1, %c0_2] : memref<864x32xbf16, #tpu.memory_space<vmem>>, vector<864x32xbf16>
    %cst = arith.constant dense<0.000000e+00> : vector<256x32xf32>
    %2 = tpu.matmul %0, %1, %cst {dimension_numbers = #tpu.dot_dimension_numbers<[1], [0], [0], [1], [0, 0, 1, 1], [], []>} : vector<256x864xbf16>, vector<864x32xbf16>, vector<256x32xf32> -> vector<256x32xf32>
    %cst_3 = arith.constant dense<0.000000e+00> : vector<256xf32>
    %3 = vector.multi_reduction <add>, %2, %cst_3 [1] : vector<256x32xf32> to vector<256xf32>
    %4 = vector.shape_cast %3 : vector<256xf32> to vector<256x1xf32>
    %cst_4 = arith.constant 3.200000e+01 : f32
    %5 = vector.broadcast %cst_4 : f32 to vector<256x1xf32>
    %6 = arith.divf %4, %5 : vector<256x1xf32>
    %7 = vector.broadcast %6 : vector<256x1xf32> to vector<256x32xf32>
    %8 = arith.subf %2, %7 : vector<256x32xf32>
    %9 = arith.mulf %8, %8 : vector<256x32xf32>
    %cst_5 = arith.constant dense<0.000000e+00> : vector<256xf32>
    %10 = vector.multi_reduction <add>, %9, %cst_5 [1] : vector<256x32xf32> to vector<256xf32>
    %11 = vector.shape_cast %10 : vector<256xf32> to vector<256x1xf32>
    %cst_6 = arith.constant 3.200000e+01 : f32
    %12 = vector.broadcast %cst_6 : f32 to vector<256x1xf32>
    %13 = arith.divf %11, %12 : vector<256x1xf32>
    %14 = vector.broadcast %6 : vector<256x1xf32> to vector<256x32xf32>
    %15 = arith.subf %2, %14 : vector<256x32xf32>
    %cst_7 = arith.constant 9.99999974E-6 : f32
    %16 = vector.broadcast %cst_7 : f32 to vector<256x1xf32>
    %17 = arith.addf %13, %16 : vector<256x1xf32>
    %18 = math.rsqrt %17 : vector<256x1xf32>
    %19 = vector.broadcast %18 : vector<256x1xf32> to vector<256x32xf32>
    %20 = arith.mulf %15, %19 : vector<256x32xf32>
    %c0_8 = arith.constant 0 : index
    %c0_9 = arith.constant 0 : index
    %21 = vector.load %arg4[%c0_8, %c0_9] : memref<1x32xf32, #tpu.memory_space<vmem>>, vector<1x32xf32>
    %22 = vector.broadcast %21 : vector<1x32xf32> to vector<256x32xf32>
    %23 = arith.mulf %20, %22 : vector<256x32xf32>
    %c0_10 = arith.constant 0 : index
    %c0_11 = arith.constant 0 : index
    %24 = vector.load %arg5[%c0_10, %c0_11] : memref<1x32xf32, #tpu.memory_space<vmem>>, vector<1x32xf32>
    %25 = vector.broadcast %24 : vector<1x32xf32> to vector<256x32xf32>
    %26 = arith.addf %23, %25 : vector<256x32xf32>
    %c0_12 = arith.constant 0 : index
    %c0_13 = arith.constant 0 : index
    %27 = vector.load %arg2[%c0_12, %c0_13] : memref<256x32xf32, #tpu.memory_space<vmem>>, vector<256x32xf32>
    %28 = arith.addf %26, %27 : vector<256x32xf32>
    %cst_14 = arith.constant 0.000000e+00 : f32
    %29 = vector.broadcast %cst_14 : f32 to vector<256x32xf32>
    %30 = arith.maximumf %28, %29 : vector<256x32xf32>
    %c0_15 = arith.constant 0 : index
    %c0_16 = arith.constant 0 : index
    %31 = vector.load %arg6[%c0_15, %c0_16] : memref<256x32xf32, #tpu.memory_space<vmem>>, vector<256x32xf32>
    tpu.vector_store %arg6[%c0_15, %c0_16], %30 {strides = array<i32>} : memref<256x32xf32, #tpu.memory_space<vmem>>, vector<256x32xf32>,
    return
  }
  func.func @transform_0(%arg0: i32) -> (i32, i32) {
    %c0_i32 = arith.constant 0 : i32
    %c0_i32_0 = arith.constant 0 : i32
    return %arg0, %c0_i32 : i32, i32
  }
  func.func @transform_1(%arg0: i32) -> (i32, i32) {
    %c0_i32 = arith.constant 0 : i32
    %c0_i32_0 = arith.constant 0 : i32
    return %arg0, %c0_i32 : i32, i32
  }
  func.func @transform_2(%arg0: i32) -> (i32, i32) {
    %c0_i32 = arith.constant 0 : i32
    %c0_i32_0 = arith.constant 0 : i32
    %c0_i32_1 = arith.constant 0 : i32
    return %c0_i32, %c0_i32_0 : i32, i32
  }
  func.func @transform_3(%arg0: i32) -> (i32, i32) {
    %c0_i32 = arith.constant 0 : i32
    %c0_i32_0 = arith.constant 0 : i32
    %c0_i32_1 = arith.constant 0 : i32
    return %c0_i32, %c0_i32_0 : i32, i32
  }
  func.func @transform_4(%arg0: i32) -> (i32, i32) {
    %c0_i32 = arith.constant 0 : i32
    %c0_i32_0 = arith.constant 0 : i32
    %c0_i32_1 = arith.constant 0 : i32
    return %c0_i32, %c0_i32_0 : i32, i32
  }
  func.func @transform_5(%arg0: i32) -> (i32, i32) {
    %c0_i32 = arith.constant 0 : i32
    %c0_i32_0 = arith.constant 0 : i32
    return %arg0, %c0_i32 : i32, i32
  }
}

</mosaic_0001>

<llo_original>
// kernel: tpu_custom_call.1
$region0: #{tpu_custom_call.1}
  #allocation0 [shape = 'u32[]', space=smem, size = 0x4, offset = 0x4, fixed_abs, tag = 'smem constant byte address 0x4 - core index']
  #allocation1 [shape = 'u32[72,128]{1,0:T(1,128)}', space=vmem, size = 0x9000, scoped, tag = 'internal scratch']
  %s0 = inlined_call_operand.vmem [shape: bf16[256,864], index: 0, kind: input, shape index: {}]
  %s1 = inlined_call_operand.vmem [shape: f32[256,32], index: 1, kind: input, shape index: {}]
  %s2 = inlined_call_operand.vmem [shape: bf16[864,32], index: 2, kind: input, shape index: {}]
  %s3 = inlined_call_operand.vmem [shape: f32[1,32], index: 3, kind: input, shape index: {}]
  %s4 = inlined_call_operand.vmem [shape: f32[1,32], index: 4, kind: input, shape index: {}]
  %s5 = inlined_call_operand.vmem [shape: f32[256,32], index: 5, kind: output, shape index: {}]
  %s6 = sld [smem:[#allocation0]]
  $region30: #{tpu_custom_call.1} parent=0
    _
  %s8 = ssub.s32 1, %s6
  %s9 = scalar_select 0, %s8, %s6
  // Predicated region
  $region2: #{tpu_custom_call.1} parent=0 // pred_check
    _
  $region3: #{tpu_custom_call.1} parent=0 // pred_check_branch
    %11 = sbr.rel (0) target = $region5
  $region4: #{tpu_custom_call.1} parent=0 // pred_region
    _
  $region5: #{tpu_custom_call.1} parent=0 // pred_fallthru
    _
  // Predicated region
  $region6: #{tpu_custom_call.1} parent=0 // pred_check
    _
  $region7: #{tpu_custom_call.1} parent=0 // pred_check_branch
    %13 = sbr.rel (0) target = $region9
  $region8: #{tpu_custom_call.1} parent=0 // pred_region
    _
  $region9: #{tpu_custom_call.1} parent=0 // pred_fallthru
    _
  // Predicated region
  $region10: #{tpu_custom_call.1} parent=0 // pred_check
    _
  $region11: #{tpu_custom_call.1} parent=0 // pred_check_branch
    %15 = sbr.rel (0) target = $region13
  $region12: #{tpu_custom_call.1} parent=0 // pred_region
    _
  $region13: #{tpu_custom_call.1} parent=0 // pred_fallthru
    _
  // Predicated region
  $region14: #{tpu_custom_call.1} parent=0 // pred_check
    _
  $region15: #{tpu_custom_call.1} parent=0 // pred_check_branch
    %17 = sbr.rel (0) target = $region17
  $region16: #{tpu_custom_call.1} parent=0 // pred_region
    _
  $region17: #{tpu_custom_call.1} parent=0 // pred_fallthru
    _
  // Predicated region
  $region18: #{tpu_custom_call.1} parent=0 // pred_check
    _
  $region19: #{tpu_custom_call.1} parent=0 // pred_check_branch
    %19 = sbr.rel (0) target = $region21
  $region20: #{tpu_custom_call.1} parent=0 // pred_region
    _
  $region21: #{tpu_custom_call.1} parent=0 // pred_fallthru
    _
  %v21 = vld [vmem:[%s0] sm:$0xff]
  %v22 = vld [vmem:[%s0 + $0x8] sm:$0xff]
  %v23 = vld [vmem:[%s0 + $0x10] sm:$0xff]
  %v24 = vld [vmem:[%s0 + $0x18] sm:$0xf]
  %v25 = vld [vmem:[%s0 + $0x1c] sm:$0xff]
  %v26 = vld [vmem:[%s0 + $0x24] sm:$0xff]
  %v27 = vld [vmem:[%s0 + $0x2c] sm:$0xff]
  %v28 = vld [vmem:[%s0 + $0x34] sm:$0xf]
  %v29 = vld [vmem:[%s0 + $0x38] sm:$0xff]
  %v30 = vld [vmem:[%s0 + $0x40] sm:$0xff]
  %v31 = vld [vmem:[%s0 + $0x48] sm:$0xff]
  %v32 = vld [vmem:[%s0 + $0x50] sm:$0xf]
  %v33 = vld [vmem:[%s0 + $0x54] sm:$0xff]
  %v34 = vld [vmem:[%s0 + $0x5c] sm:$0xff]
  %v35 = vld [vmem:[%s0 + $0x64] sm:$0xff]
  %v36 = vld [vmem:[%s0 + $0x6c] sm:$0xf]
  %v37 = vld [vmem:[%s0 + $0x70] sm:$0xff]
  %v38 = vld [vmem:[%s0 + $0x78] sm:$0xff]
  %v39 = vld [vmem:[%s0 + $0x80] sm:$0xff]
  %v40 = vld [vmem:[%s0 + $0x88] sm:$0xf]
  %v41 = vld [vmem:[%s0 + $0x8c] sm:$0xff]
  %v42 = vld [vmem:[%s0 + $0x94] sm:$0xff]
  %v43 = vld [vmem:[%s0 + $0x9c] sm:$0xff]
  %v44 = vld [vmem:[%s0 + $0xa4] sm:$0xf]
  %v45 = vld [vmem:[%s0 + $0xa8] sm:$0xff]
  %v46 = vld [vmem:[%s0 + $0xb0] sm:$0xff]
  %v47 = vld [vmem:[%s0 + $0xb8] sm:$0xff]
  %v48 = vld [vmem:[%s0 + $0xc0] sm:$0xf]
  %v49 = vld [vmem:[%s0 + $0xc4] sm:$0xff]
  %v50 = vld [vmem:[%s0 + $0xcc] sm:$0xff]
  %v51 = vld [vmem:[%s0 + $0xd4] sm:$0xff]
  %v52 = vld [vmem:[%s0 + $0xdc] sm:$0xf]
  %v53 = vld [vmem:[%s0 + $0xe0] sm:$0xff]
  %v54 = vld [vmem:[%s0 + $0xe8] sm:$0xff]
  %v55 = vld [vmem:[%s0 + $0xf0] sm:$0xff]
  %v56 = vld [vmem:[%s0 + $0xf8] sm:$0xf]
  %v57 = vld [vmem:[%s0 + $0xfc] sm:$0xff]
  %v58 = vld [vmem:[%s0 + $0x104] sm:$0xff]
  %v59 = vld [vmem:[%s0 + $0x10c] sm:$0xff]
  %v60 = vld [vmem:[%s0 + $0x114] sm:$0xf]
  %v61 = vld [vmem:[%s0 + $0x118] sm:$0xff]
  %v62 = vld [vmem:[%s0 + $0x120] sm:$0xff]
  %v63 = vld [vmem:[%s0 + $0x128] sm:$0xff]
  %v64 = vld [vmem:[%s0 + $0x130] sm:$0xf]
  %v65 = vld [vmem:[%s0 + $0x134] sm:$0xff]
  %v66 = vld [vmem:[%s0 + $0x13c] sm:$0xff]
  %v67 = vld [vmem:[%s0 + $0x144] sm:$0xff]
  %v68 = vld [vmem:[%s0 + $0x14c] sm:$0xf]
  %v69 = vld [vmem:[%s0 + $0x150] sm:$0xff]
  %v70 = vld [vmem:[%s0 + $0x158] sm:$0xff]
  %v71 = vld [vmem:[%s0 + $0x160] sm:$0xff]
  %v72 = vld [vmem:[%s0 + $0x168] sm:$0xf]
  %v73 = vld [vmem:[%s0 + $0x16c] sm:$0xff]
  %v74 = vld [vmem:[%s0 + $0x174] sm:$0xff]
  %v75 = vld [vmem:[%s0 + $0x17c] sm:$0xff]
  %v76 = vld [vmem:[%s0 + $0x184] sm:$0xf]
  %v77 = vld [vmem:[%s0 + $0x188] sm:$0xff]
  %v78 = vld [vmem:[%s0 + $0x190] sm:$0xff]
  %v79 = vld [vmem:[%s0 + $0x198] sm:$0xff]
  %v80 = vld [vmem:[%s0 + $0x1a0] sm:$0xf]
  %v81 = vld [vmem:[%s0 + $0x1a4] sm:$0xff]
  %v82 = vld [vmem:[%s0 + $0x1ac] sm:$0xff]
  %v83 = vld [vmem:[%s0 + $0x1b4] sm:$0xff]
  %v84 = vld [vmem:[%s0 + $0x1bc] sm:$0xf]
  %v85 = vld [vmem:[%s0 + $0x1c0] sm:$0xff]
  %v86 = vld [vmem:[%s0 + $0x1c8] sm:$0xff]
  %v87 = vld [vmem:[%s0 + $0x1d0] sm:$0xff]
  %v88 = vld [vmem:[%s0 + $0x1d8] sm:$0xf]
  %v89 = vld [vmem:[%s0 + $0x1dc] sm:$0xff]
  %v90 = vld [vmem:[%s0 + $0x1e4] sm:$0xff]
  %v91 = vld [vmem:[%s0 + $0x1ec] sm:$0xff]
  %v92 = vld [vmem:[%s0 + $0x1f4] sm:$0xf]
  %v93 = vld [vmem:[%s0 + $0x1f8] sm:$0xff]
  %v94 = vld [vmem:[%s0 + $0x200] sm:$0xff]
  %v95 = vld [vmem:[%s0 + $0x208] sm:$0xff]
  %v96 = vld [vmem:[%s0 + $0x210] sm:$0xf]
  %v97 = vld [vmem:[%s0 + $0x214] sm:$0xff]
  %v98 = vld [vmem:[%s0 + $0x21c] sm:$0xff]
  %v99 = vld [vmem:[%s0 + $0x224] sm:$0xff]
  %v100 = vld [vmem:[%s0 + $0x22c] sm:$0xf]
  %v101 = vld [vmem:[%s0 + $0x230] sm:$0xff]
  %v102 = vld [vmem:[%s0 + $0x238] sm:$0xff]
  %v103 = vld [vmem:[%s0 + $0x240] sm:$0xff]
  %v104 = vld [vmem:[%s0 + $0x248] sm:$0xf]
  %v105 = vld [vmem:[%s0 + $0x24c] sm:$0xff]
  %v106 = vld [vmem:[%s0 + $0x254] sm:$0xff]
  %v107 = vld [vmem:[%s0 + $0x25c] sm:$0xff]
  %v108 = vld [vmem:[%s0 + $0x264] sm:$0xf]
  %v109 = vld [vmem:[%s0 + $0x268] sm:$0xff]
  %v110 = vld [vmem:[%s0 + $0x270] sm:$0xff]
  %v111 = vld [vmem:[%s0 + $0x278] sm:$0xff]
  %v112 = vld [vmem:[%s0 + $0x280] sm:$0xf]
  %v113 = vld [vmem:[%s0 + $0x284] sm:$0xff]
  %v114 = vld [vmem:[%s0 + $0x28c] sm:$0xff]
  %v115 = vld [vmem:[%s0 + $0x294] sm:$0xff]
  %v116 = vld [vmem:[%s0 + $0x29c] sm:$0xf]
  %v117 = vld [vmem:[%s0 + $0x2a0] sm:$0xff]
  %v118 = vld [vmem:[%s0 + $0x2a8] sm:$0xff]
  %v119 = vld [vmem:[%s0 + $0x2b0] sm:$0xff]
  %v120 = vld [vmem:[%s0 + $0x2b8] sm:$0xf]
  %v121 = vld [vmem:[%s0 + $0x2bc] sm:$0xff]
  %v122 = vld [vmem:[%s0 + $0x2c4] sm:$0xff]
  %v123 = vld [vmem:[%s0 + $0x2cc] sm:$0xff]
  %v124 = vld [vmem:[%s0 + $0x2d4] sm:$0xf]
  %v125 = vld [vmem:[%s0 + $0x2d8] sm:$0xff]
  %v126 = vld [vmem:[%s0 + $0x2e0] sm:$0xff]
  %v127 = vld [vmem:[%s0 + $0x2e8] sm:$0xff]
  %v128 = vld [vmem:[%s0 + $0x2f0] sm:$0xf]
  %v129 = vld [vmem:[%s0 + $0x2f4] sm:$0xff]
  %v130 = vld [vmem:[%s0 + $0x2fc] sm:$0xff]
  %v131 = vld [vmem:[%s0 + $0x304] sm:$0xff]
  %v132 = vld [vmem:[%s0 + $0x30c] sm:$0xf]
  %v133 = vld [vmem:[%s0 + $0x310] sm:$0xff]
  %v134 = vld [vmem:[%s0 + $0x318] sm:$0xff]
  %v135 = vld [vmem:[%s0 + $0x320] sm:$0xff]
  %v136 = vld [vmem:[%s0 + $0x328] sm:$0xf]
  %v137 = vld [vmem:[%s0 + $0x32c] sm:$0xff]
  %v138 = vld [vmem:[%s0 + $0x334] sm:$0xff]
  %v139 = vld [vmem:[%s0 + $0x33c] sm:$0xff]
  %v140 = vld [vmem:[%s0 + $0x344] sm:$0xf]
  %v141 = vld [vmem:[%s0 + $0x348] sm:$0xff]
  %v142 = vld [vmem:[%s0 + $0x350] sm:$0xff]
  %v143 = vld [vmem:[%s0 + $0x358] sm:$0xff]
  %v144 = vld [vmem:[%s0 + $0x360] sm:$0xf]
  %v145 = vld [vmem:[%s0 + $0x364] sm:$0xff]
  %v146 = vld [vmem:[%s0 + $0x36c] sm:$0xff]
  %v147 = vld [vmem:[%s0 + $0x374] sm:$0xff]
  %v148 = vld [vmem:[%s0 + $0x37c] sm:$0xf]
  %v149 = vld [vmem:[%s2] sm:$0xf]
  %v150 = vld [vmem:[%s2 + $0x4] sm:$0xf]
  %v151 = vld [vmem:[%s2 + $0x8] sm:$0xf]
  %v152 = vld [vmem:[%s2 + $0xc] sm:$0xf]
  %v153 = vld [vmem:[%s2 + $0x10] sm:$0xf]
  %v154 = vld [vmem:[%s2 + $0x14] sm:$0xf]
  %v155 = vld [vmem:[%s2 + $0x18] sm:$0xf]
  %v156 = vld [vmem:[%s2 + $0x1c] sm:$0xf]
  %v157 = vld [vmem:[%s2 + $0x20] sm:$0xf]
  %v158 = vld [vmem:[%s2 + $0x24] sm:$0xf]
  %v159 = vld [vmem:[%s2 + $0x28] sm:$0xf]
  %v160 = vld [vmem:[%s2 + $0x2c] sm:$0xf]
  %v161 = vld [vmem:[%s2 + $0x30] sm:$0xf]
  %v162 = vld [vmem:[%s2 + $0x34] sm:$0xf]
  %v163 = vld [vmem:[%s2 + $0x38] sm:$0xf]
  %v164 = vld [vmem:[%s2 + $0x3c] sm:$0xf]
  %v165 = vld [vmem:[%s2 + $0x40] sm:$0xf]
  %v166 = vld [vmem:[%s2 + $0x44] sm:$0xf]
  %v167 = vld [vmem:[%s2 + $0x48] sm:$0xf]
  %v168 = vld [vmem:[%s2 + $0x4c] sm:$0xf]
  %v169 = vld [vmem:[%s2 + $0x50] sm:$0xf]
  %v170 = vld [vmem:[%s2 + $0x54] sm:$0xf]
  %v171 = vld [vmem:[%s2 + $0x58] sm:$0xf]
  %v172 = vld [vmem:[%s2 + $0x5c] sm:$0xf]
  %v173 = vld [vmem:[%s2 + $0x60] sm:$0xf]
  %v174 = vld [vmem:[%s2 + $0x64] sm:$0xf]
  %v175 = vld [vmem:[%s2 + $0x68] sm:$0xf]
  %v176 = vld [vmem:[%s2 + $0x6c] sm:$0xf]
  %v177 = vld [vmem:[%s2 + $0x70] sm:$0xf]
  %v178 = vld [vmem:[%s2 + $0x74] sm:$0xf]
  %v179 = vld [vmem:[%s2 + $0x78] sm:$0xf]
  %v180 = vld [vmem:[%s2 + $0x7c] sm:$0xf]
  %v181 = vld [vmem:[%s2 + $0x80] sm:$0xf]
  %v182 = vld [vmem:[%s2 + $0x84] sm:$0xf]
  %v183 = vld [vmem:[%s2 + $0x88] sm:$0xf]
  %v184 = vld [vmem:[%s2 + $0x8c] sm:$0xf]
  %v185 = vld [vmem:[%s2 + $0x90] sm:$0xf]
  %v186 = vld [vmem:[%s2 + $0x94] sm:$0xf]
  %v187 = vld [vmem:[%s2 + $0x98] sm:$0xf]
  %v188 = vld [vmem:[%s2 + $0x9c] sm:$0xf]
  %v189 = vld [vmem:[%s2 + $0xa0] sm:$0xf]
  %v190 = vld [vmem:[%s2 + $0xa4] sm:$0xf]
  %v191 = vld [vmem:[%s2 + $0xa8] sm:$0xf]
  %v192 = vld [vmem:[%s2 + $0xac] sm:$0xf]
  %v193 = vld [vmem:[%s2 + $0xb0] sm:$0xf]
  %v194 = vld [vmem:[%s2 + $0xb4] sm:$0xf]
  %v195 = vld [vmem:[%s2 + $0xb8] sm:$0xf]
  %v196 = vld [vmem:[%s2 + $0xbc] sm:$0xf]
  %v197 = vld [vmem:[%s2 + $0xc0] sm:$0xf]
  %v198 = vld [vmem:[%s2 + $0xc4] sm:$0xf]
  %v199 = vld [vmem:[%s2 + $0xc8] sm:$0xf]
  %v200 = vld [vmem:[%s2 + $0xcc] sm:$0xf]
  %v201 = vld [vmem:[%s2 + $0xd0] sm:$0xf]
  %v202 = vld [vmem:[%s2 + $0xd4] sm:$0xf]
  %v203 = vld [vmem:[%s2 + $0xd8] sm:$0xf]
  %v204 = vld [vmem:[%s2 + $0xdc] sm:$0xf]
  %v205 = vld [vmem:[%s2 + $0xe0] sm:$0xf]
  %v206 = vld [vmem:[%s2 + $0xe4] sm:$0xf]
  %v207 = vld [vmem:[%s2 + $0xe8] sm:$0xf]
  %v208 = vld [vmem:[%s2 + $0xec] sm:$0xf]
  %v209 = vld [vmem:[%s2 + $0xf0] sm:$0xf]
  %v210 = vld [vmem:[%s2 + $0xf4] sm:$0xf]
  %v211 = vld [vmem:[%s2 + $0xf8] sm:$0xf]
  %v212 = vld [vmem:[%s2 + $0xfc] sm:$0xf]
  %v213 = vld [vmem:[%s2 + $0x100] sm:$0xf]
  %v214 = vld [vmem:[%s2 + $0x104] sm:$0xf]
  %v215 = vld [vmem:[%s2 + $0x108] sm:$0xf]
  %v216 = vld [vmem:[%s2 + $0x10c] sm:$0xf]
  %v217 = vld [vmem:[%s2 + $0x110] sm:$0xf]
  %v218 = vld [vmem:[%s2 + $0x114] sm:$0xf]
  %v219 = vld [vmem:[%s2 + $0x118] sm:$0xf]
  %v220 = vld [vmem:[%s2 + $0x11c] sm:$0xf]
  %v221 = vld [vmem:[%s2 + $0x120] sm:$0xf]
  %v222 = vld [vmem:[%s2 + $0x124] sm:$0xf]
  %v223 = vld [vmem:[%s2 + $0x128] sm:$0xf]
  %v224 = vld [vmem:[%s2 + $0x12c] sm:$0xf]
  %v225 = vld [vmem:[%s2 + $0x130] sm:$0xf]
  %v226 = vld [vmem:[%s2 + $0x134] sm:$0xf]
  %v227 = vld [vmem:[%s2 + $0x138] sm:$0xf]
  %v228 = vld [vmem:[%s2 + $0x13c] sm:$0xf]
  %v229 = vld [vmem:[%s2 + $0x140] sm:$0xf]
  %v230 = vld [vmem:[%s2 + $0x144] sm:$0xf]
  %v231 = vld [vmem:[%s2 + $0x148] sm:$0xf]
  %v232 = vld [vmem:[%s2 + $0x14c] sm:$0xf]
  %v233 = vld [vmem:[%s2 + $0x150] sm:$0xf]
  %v234 = vld [vmem:[%s2 + $0x154] sm:$0xf]
  %v235 = vld [vmem:[%s2 + $0x158] sm:$0xf]
  %v236 = vld [vmem:[%s2 + $0x15c] sm:$0xf]
  %v237 = vld [vmem:[%s2 + $0x160] sm:$0xf]
  %v238 = vld [vmem:[%s2 + $0x164] sm:$0xf]
  %v239 = vld [vmem:[%s2 + $0x168] sm:$0xf]
  %v240 = vld [vmem:[%s2 + $0x16c] sm:$0xf]
  %v241 = vld [vmem:[%s2 + $0x170] sm:$0xf]
  %v242 = vld [vmem:[%s2 + $0x174] sm:$0xf]
  %v243 = vld [vmem:[%s2 + $0x178] sm:$0xf]
  %v244 = vld [vmem:[%s2 + $0x17c] sm:$0xf]
  %v245 = vld [vmem:[%s2 + $0x180] sm:$0xf]
  %v246 = vld [vmem:[%s2 + $0x184] sm:$0xf]
  %v247 = vld [vmem:[%s2 + $0x188] sm:$0xf]
  %v248 = vld [vmem:[%s2 + $0x18c] sm:$0xf]
  %v249 = vld [vmem:[%s2 + $0x190] sm:$0xf]
  %v250 = vld [vmem:[%s2 + $0x194] sm:$0xf]
  %v251 = vld [vmem:[%s2 + $0x198] sm:$0xf]
  %v252 = vld [vmem:[%s2 + $0x19c] sm:$0xf]
  %v253 = vld [vmem:[%s2 + $0x1a0] sm:$0xf]
  %v254 = vld [vmem:[%s2 + $0x1a4] sm:$0xf]
  %v255 = vld [vmem:[%s2 + $0x1a8] sm:$0xf]
  %v256 = vld [vmem:[%s2 + $0x1ac] sm:$0xf]
  %v385 = vunpack.c.l.b16 %v21
  %v386 = vunpack.c.h.b16 %v21
  %v387 = vunpack.c.l.b16 %v22
  %v388 = vunpack.c.h.b16 %v22
  %v389 = vunpack.c.l.b16 %v23
  %v390 = vunpack.c.h.b16 %v23
  %v391 = vunpack.c.l.b16 %v24
  %v392 = vunpack.c.l.b16 %v25
  %v393 = vunpack.c.h.b16 %v25
  %v394 = vunpack.c.l.b16 %v26
  %v395 = vunpack.c.h.b16 %v26
  %v396 = vunpack.c.l.b16 %v27
  %v397 = vunpack.c.h.b16 %v27
  %v398 = vunpack.c.l.b16 %v28
  %v399 = vunpack.c.l.b16 %v29
  %v400 = vunpack.c.h.b16 %v29
  %v401 = vunpack.c.l.b16 %v30
  %v402 = vunpack.c.h.b16 %v30
  %v403 = vunpack.c.l.b16 %v31
  %v404 = vunpack.c.h.b16 %v31
  %v405 = vunpack.c.l.b16 %v32
  %v406 = vunpack.c.l.b16 %v33
  %v407 = vunpack.c.h.b16 %v33
  %v408 = vunpack.c.l.b16 %v34
  %v409 = vunpack.c.h.b16 %v34
  %v410 = vunpack.c.l.b16 %v35
  %v411 = vunpack.c.h.b16 %v35
  %v412 = vunpack.c.l.b16 %v36
  %v413 = vunpack.c.l.b16 %v37
  %v414 = vunpack.c.h.b16 %v37
  %v415 = vunpack.c.l.b16 %v38
  %v416 = vunpack.c.h.b16 %v38
  %v417 = vunpack.c.l.b16 %v39
  %v418 = vunpack.c.h.b16 %v39
  %v419 = vunpack.c.l.b16 %v40
  %v420 = vunpack.c.l.b16 %v41
  %v421 = vunpack.c.h.b16 %v41
  %v422 = vunpack.c.l.b16 %v42
  %v423 = vunpack.c.h.b16 %v42
  %v424 = vunpack.c.l.b16 %v43
  %v425 = vunpack.c.h.b16 %v43
  %v426 = vunpack.c.l.b16 %v44
  %v427 = vunpack.c.l.b16 %v45
  %v428 = vunpack.c.h.b16 %v45
  %v429 = vunpack.c.l.b16 %v46
  %v430 = vunpack.c.h.b16 %v46
  %v431 = vunpack.c.l.b16 %v47
  %v432 = vunpack.c.h.b16 %v47
  %v433 = vunpack.c.l.b16 %v48
  %v434 = vunpack.c.l.b16 %v49
  %v435 = vunpack.c.h.b16 %v49
  %v436 = vunpack.c.l.b16 %v50
  %v437 = vunpack.c.h.b16 %v50
  %v438 = vunpack.c.l.b16 %v51
  %v439 = vunpack.c.h.b16 %v51
  %v440 = vunpack.c.l.b16 %v52
  %v441 = vunpack.c.l.b16 %v53
  %v442 = vunpack.c.h.b16 %v53
  %v443 = vunpack.c.l.b16 %v54
  %v444 = vunpack.c.h.b16 %v54
  %v445 = vunpack.c.l.b16 %v55
  %v446 = vunpack.c.h.b16 %v55
  %v447 = vunpack.c.l.b16 %v56
  %v448 = vunpack.c.l.b16 %v57
  %v449 = vunpack.c.h.b16 %v57
  %v450 = vunpack.c.l.b16 %v58
  %v451 = vunpack.c.h.b16 %v58
  %v452 = vunpack.c.l.b16 %v59
  %v453 = vunpack.c.h.b16 %v59
  %v454 = vunpack.c.l.b16 %v60
  %v455 = vunpack.c.l.b16 %v61
  %v456 = vunpack.c.h.b16 %v61
  %v457 = vunpack.c.l.b16 %v62
  %v458 = vunpack.c.h.b16 %v62
  %v459 = vunpack.c.l.b16 %v63
  %v460 = vunpack.c.h.b16 %v63
  %v461 = vunpack.c.l.b16 %v64
  %v462 = vunpack.c.l.b16 %v65
  %v463 = vunpack.c.h.b16 %v65
  %v464 = vunpack.c.l.b16 %v66
  %v465 = vunpack.c.h.b16 %v66
  %v466 = vunpack.c.l.b16 %v67
  %v467 = vunpack.c.h.b16 %v67
  %v468 = vunpack.c.l.b16 %v68
  %v469 = vunpack.c.l.b16 %v69
  %v470 = vunpack.c.h.b16 %v69
  %v471 = vunpack.c.l.b16 %v70
  %v472 = vunpack.c.h.b16 %v70
  %v473 = vunpack.c.l.b16 %v71
  %v474 = vunpack.c.h.b16 %v71
  %v475 = vunpack.c.l.b16 %v72
  %v476 = vunpack.c.l.b16 %v73
  %v477 = vunpack.c.h.b16 %v73
  %v478 = vunpack.c.l.b16 %v74
  %v479 = vunpack.c.h.b16 %v74
  %v480 = vunpack.c.l.b16 %v75
  %v481 = vunpack.c.h.b16 %v75
  %v482 = vunpack.c.l.b16 %v76
  %v483 = vunpack.c.l.b16 %v77
  %v484 = vunpack.c.h.b16 %v77
  %v485 = vunpack.c.l.b16 %v78
  %v486 = vunpack.c.h.b16 %v78
  %v487 = vunpack.c.l.b16 %v79
  %v488 = vunpack.c.h.b16 %v79
  %v489 = vunpack.c.l.b16 %v80
  %v490 = vunpack.c.l.b16 %v81
  %v491 = vunpack.c.h.b16 %v81
  %v492 = vunpack.c.l.b16 %v82
  %v493 = vunpack.c.h.b16 %v82
  %v494 = vunpack.c.l.b16 %v83
  %v495 = vunpack.c.h.b16 %v83
  %v496 = vunpack.c.l.b16 %v84
  %v497 = vunpack.c.l.b16 %v85
  %v498 = vunpack.c.h.b16 %v85
  %v499 = vunpack.c.l.b16 %v86
  %v500 = vunpack.c.h.b16 %v86
  %v501 = vunpack.c.l.b16 %v87
  %v502 = vunpack.c.h.b16 %v87
  %v503 = vunpack.c.l.b16 %v88
  %v504 = vunpack.c.l.b16 %v89
  %v505 = vunpack.c.h.b16 %v89
  %v506 = vunpack.c.l.b16 %v90
  %v507 = vunpack.c.h.b16 %v90
  %v508 = vunpack.c.l.b16 %v91
  %v509 = vunpack.c.h.b16 %v91
  %v510 = vunpack.c.l.b16 %v92
  %v511 = vunpack.c.l.b16 %v93
  %v512 = vunpack.c.h.b16 %v93
  %v513 = vunpack.c.l.b16 %v94
  %v514 = vunpack.c.h.b16 %v94
  %v515 = vunpack.c.l.b16 %v95
  %v516 = vunpack.c.h.b16 %v95
  %v517 = vunpack.c.l.b16 %v96
  %v518 = vunpack.c.l.b16 %v97
  %v519 = vunpack.c.h.b16 %v97
  %v520 = vunpack.c.l.b16 %v98
  %v521 = vunpack.c.h.b16 %v98
  %v522 = vunpack.c.l.b16 %v99
  %v523 = vunpack.c.h.b16 %v99
  %v524 = vunpack.c.l.b16 %v100
  %v525 = vunpack.c.l.b16 %v101
  %v526 = vunpack.c.h.b16 %v101
  %v527 = vunpack.c.l.b16 %v102
  %v528 = vunpack.c.h.b16 %v102
  %v529 = vunpack.c.l.b16 %v103
  %v530 = vunpack.c.h.b16 %v103
  %v531 = vunpack.c.l.b16 %v104
  %v532 = vunpack.c.l.b16 %v105
  %v533 = vunpack.c.h.b16 %v105
  %v534 = vunpack.c.l.b16 %v106
  %v535 = vunpack.c.h.b16 %v106
  %v536 = vunpack.c.l.b16 %v107
  %v537 = vunpack.c.h.b16 %v107
  %v538 = vunpack.c.l.b16 %v108
  %v539 = vunpack.c.l.b16 %v109
  %v540 = vunpack.c.h.b16 %v109
  %v541 = vunpack.c.l.b16 %v110
  %v542 = vunpack.c.h.b16 %v110
  %v543 = vunpack.c.l.b16 %v111
  %v544 = vunpack.c.h.b16 %v111
  %v545 = vunpack.c.l.b16 %v112
  %v546 = vunpack.c.l.b16 %v113
  %v547 = vunpack.c.h.b16 %v113
  %v548 = vunpack.c.l.b16 %v114
  %v549 = vunpack.c.h.b16 %v114
  %v550 = vunpack.c.l.b16 %v115
  %v551 = vunpack.c.h.b16 %v115
  %v552 = vunpack.c.l.b16 %v116
  %v553 = vunpack.c.l.b16 %v117
  %v554 = vunpack.c.h.b16 %v117
  %v555 = vunpack.c.l.b16 %v118
  %v556 = vunpack.c.h.b16 %v118
  %v557 = vunpack.c.l.b16 %v119
  %v558 = vunpack.c.h.b16 %v119
  %v559 = vunpack.c.l.b16 %v120
  %v560 = vunpack.c.l.b16 %v121
  %v561 = vunpack.c.h.b16 %v121
  %v562 = vunpack.c.l.b16 %v122
  %v563 = vunpack.c.h.b16 %v122
  %v564 = vunpack.c.l.b16 %v123
  %v565 = vunpack.c.h.b16 %v123
  %v566 = vunpack.c.l.b16 %v124
  %v567 = vunpack.c.l.b16 %v125
  %v568 = vunpack.c.h.b16 %v125
  %v569 = vunpack.c.l.b16 %v126
  %v570 = vunpack.c.h.b16 %v126
  %v571 = vunpack.c.l.b16 %v127
  %v572 = vunpack.c.h.b16 %v127
  %v573 = vunpack.c.l.b16 %v128
  %v574 = vunpack.c.l.b16 %v129
  %v575 = vunpack.c.h.b16 %v129
  %v576 = vunpack.c.l.b16 %v130
  %v577 = vunpack.c.h.b16 %v130
  %v578 = vunpack.c.l.b16 %v131
  %v579 = vunpack.c.h.b16 %v131
  %v580 = vunpack.c.l.b16 %v132
  %v581 = vunpack.c.l.b16 %v133
  %v582 = vunpack.c.h.b16 %v133
  %v583 = vunpack.c.l.b16 %v134
  %v584 = vunpack.c.h.b16 %v134
  %v585 = vunpack.c.l.b16 %v135
  %v586 = vunpack.c.h.b16 %v135
  %v587 = vunpack.c.l.b16 %v136
  %v588 = vunpack.c.l.b16 %v137
  %v589 = vunpack.c.h.b16 %v137
  %v590 = vunpack.c.l.b16 %v138
  %v591 = vunpack.c.h.b16 %v138
  %v592 = vunpack.c.l.b16 %v139
  %v593 = vunpack.c.h.b16 %v139
  %v594 = vunpack.c.l.b16 %v140
  %v595 = vunpack.c.l.b16 %v141
  %v596 = vunpack.c.h.b16 %v141
  %v597 = vunpack.c.l.b16 %v142
  %v598 = vunpack.c.h.b16 %v142
  %v599 = vunpack.c.l.b16 %v143
  %v600 = vunpack.c.h.b16 %v143
  %v601 = vunpack.c.l.b16 %v144
  %v602 = vunpack.c.l.b16 %v145
  %v603 = vunpack.c.h.b16 %v145
  %v604 = vunpack.c.l.b16 %v146
  %v605 = vunpack.c.h.b16 %v146
  %v606 = vunpack.c.l.b16 %v147
  %v607 = vunpack.c.h.b16 %v147
  %v608 = vunpack.c.l.b16 %v148
  %v609 = vpack.c.b16 %v392, %v385
  %v610 = vpack.c.b16 %v393, %v386
  %v611 = vpack.c.b16 %v394, %v387
  %v612 = vpack.c.b16 %v395, %v388
  %v613 = vpack.c.b16 %v396, %v389
  %v614 = vpack.c.b16 %v397, %v390
  %v615 = vpack.c.b16 %v398, %v391
  %v616 = vpack.c.b16 %v406, %v399
  %v617 = vpack.c.b16 %v407, %v400
  %v618 = vpack.c.b16 %v408, %v401
  %v619 = vpack.c.b16 %v409, %v402
  %v620 = vpack.c.b16 %v410, %v403
  %v621 = vpack.c.b16 %v411, %v404
  %v622 = vpack.c.b16 %v412, %v405
  %v623 = vpack.c.b16 %v420, %v413
  %v624 = vpack.c.b16 %v421, %v414
  %v625 = vpack.c.b16 %v422, %v415
  %v626 = vpack.c.b16 %v423, %v416
  %v627 = vpack.c.b16 %v424, %v417
  %v628 = vpack.c.b16 %v425, %v418
  %v629 = vpack.c.b16 %v426, %v419
  %v630 = vpack.c.b16 %v434, %v427
  %v631 = vpack.c.b16 %v435, %v428
  %v632 = vpack.c.b16 %v436, %v429
  %v633 = vpack.c.b16 %v437, %v430
  %v634 = vpack.c.b16 %v438, %v431
  %v635 = vpack.c.b16 %v439, %v432
  %v636 = vpack.c.b16 %v440, %v433
  %v637 = vpack.c.b16 %v448, %v441
  %v638 = vpack.c.b16 %v449, %v442
  %v639 = vpack.c.b16 %v450, %v443
  %v640 = vpack.c.b16 %v451, %v444
  %v641 = vpack.c.b16 %v452, %v445
  %v642 = vpack.c.b16 %v453, %v446
  %v643 = vpack.c.b16 %v454, %v447
  %v644 = vpack.c.b16 %v462, %v455
  %v645 = vpack.c.b16 %v463, %v456
  %v646 = vpack.c.b16 %v464, %v457
  %v647 = vpack.c.b16 %v465, %v458
  %v648 = vpack.c.b16 %v466, %v459
  %v649 = vpack.c.b16 %v467, %v460
  %v650 = vpack.c.b16 %v468, %v461
  %v651 = vpack.c.b16 %v476, %v469
  %v652 = vpack.c.b16 %v477, %v470
  %v653 = vpack.c.b16 %v478, %v471
  %v654 = vpack.c.b16 %v479, %v472
  %v655 = vpack.c.b16 %v480, %v473
  %v656 = vpack.c.b16 %v481, %v474
  %v657 = vpack.c.b16 %v482, %v475
  %v658 = vpack.c.b16 %v490, %v483
  %v659 = vpack.c.b16 %v491, %v484
  %v660 = vpack.c.b16 %v492, %v485
  %v661 = vpack.c.b16 %v493, %v486
  %v662 = vpack.c.b16 %v494, %v487
  %v663 = vpack.c.b16 %v495, %v488
  %v664 = vpack.c.b16 %v496, %v489
  %v665 = vpack.c.b16 %v504, %v497
  %v666 = vpack.c.b16 %v505, %v498
  %v667 = vpack.c.b16 %v506, %v499
  %v668 = vpack.c.b16 %v507, %v500
  %v669 = vpack.c.b16 %v508, %v501
  %v670 = vpack.c.b16 %v509, %v502
  %v671 = vpack.c.b16 %v510, %v503
  %v672 = vpack.c.b16 %v518, %v511
  %v673 = vpack.c.b16 %v519, %v512
  %v674 = vpack.c.b16 %v520, %v513
  %v675 = vpack.c.b16 %v521, %v514
  %v676 = vpack.c.b16 %v522, %v515
  %v677 = vpack.c.b16 %v523, %v516
  %v678 = vpack.c.b16 %v524, %v517
  %v679 = vpack.c.b16 %v532, %v525
  %v680 = vpack.c.b16 %v533, %v526
  %v681 = vpack.c.b16 %v534, %v527
  %v682 = vpack.c.b16 %v535, %v528
  %v683 = vpack.c.b16 %v536, %v529
  %v684 = vpack.c.b16 %v537, %v530
  %v685 = vpack.c.b16 %v538, %v531
  %v686 = vpack.c.b16 %v546, %v539
  %v687 = vpack.c.b16 %v547, %v540
  %v688 = vpack.c.b16 %v548, %v541
  %v689 = vpack.c.b16 %v549, %v542
  %v690 = vpack.c.b16 %v550, %v543
  %v691 = vpack.c.b16 %v551, %v544
  %v692 = vpack.c.b16 %v552, %v545
  %v693 = vpack.c.b16 %v560, %v553
  %v694 = vpack.c.b16 %v561, %v554
  %v695 = vpack.c.b16 %v562, %v555
  %v696 = vpack.c.b16 %v563, %v556
  %v697 = vpack.c.b16 %v564, %v557
  %v698 = vpack.c.b16 %v565, %v558
  %v699 = vpack.c.b16 %v566, %v559
  %v700 = vpack.c.b16 %v574, %v567
  %v701 = vpack.c.b16 %v575, %v568
  %v702 = vpack.c.b16 %v576, %v569
  %v703 = vpack.c.b16 %v577, %v570
  %v704 = vpack.c.b16 %v578, %v571
  %v705 = vpack.c.b16 %v579, %v572
  %v706 = vpack.c.b16 %v580, %v573
  %v707 = vpack.c.b16 %v588, %v581
  %v708 = vpack.c.b16 %v589, %v582
  %v709 = vpack.c.b16 %v590, %v583
  %v710 = vpack.c.b16 %v591, %v584
  %v711 = vpack.c.b16 %v592, %v585
  %v712 = vpack.c.b16 %v593, %v586
  %v713 = vpack.c.b16 %v594, %v587
  %v714 = vpack.c.b16 %v602, %v595
  %v715 = vpack.c.b16 %v603, %v596
  %v716 = vpack.c.b16 %v604, %v597
  %v717 = vpack.c.b16 %v605, %v598
  %v718 = vpack.c.b16 %v606, %v599
  %v719 = vpack.c.b16 %v607, %v600
  %v720 = vpack.c.b16 %v608, %v601
  %v925 = vunpack.c.l.b16 %v149
  %v926 = vunpack.c.l.b16 %v150
  %v927 = vunpack.c.l.b16 %v151
  %v928 = vunpack.c.l.b16 %v152
  %v929 = vunpack.c.l.b16 %v153
  %v930 = vunpack.c.l.b16 %v154
  %v931 = vunpack.c.l.b16 %v155
  %v932 = vunpack.c.l.b16 %v156
  %v933 = vunpack.c.l.b16 %v157
  %v934 = vunpack.c.l.b16 %v158
  %v935 = vunpack.c.l.b16 %v159
  %v936 = vunpack.c.l.b16 %v160
  %v937 = vunpack.c.l.b16 %v161
  %v938 = vunpack.c.l.b16 %v162
  %v939 = vunpack.c.l.b16 %v163
  %v940 = vunpack.c.l.b16 %v164
  %v941 = vunpack.c.l.b16 %v165
  %v942 = vunpack.c.l.b16 %v166
  %v943 = vunpack.c.l.b16 %v167
  %v944 = vunpack.c.l.b16 %v168
  %v945 = vunpack.c.l.b16 %v169
  %v946 = vunpack.c.l.b16 %v170
  %v947 = vunpack.c.l.b16 %v171
  %v948 = vunpack.c.l.b16 %v172
  %v949 = vunpack.c.l.b16 %v173
  %v950 = vunpack.c.l.b16 %v174
  %v951 = vunpack.c.l.b16 %v175
  %v952 = vunpack.c.l.b16 %v176
  %v953 = vunpack.c.l.b16 %v177
  %v954 = vunpack.c.l.b16 %v178
  %v955 = vunpack.c.l.b16 %v179
  %v956 = vunpack.c.l.b16 %v180
  %v957 = vunpack.c.l.b16 %v181
  %v958 = vunpack.c.l.b16 %v182
  %v959 = vunpack.c.l.b16 %v183
  %v960 = vunpack.c.l.b16 %v184
  %v961 = vunpack.c.l.b16 %v185
  %v962 = vunpack.c.l.b16 %v186
  %v963 = vunpack.c.l.b16 %v187
  %v964 = vunpack.c.l.b16 %v188
  %v965 = vunpack.c.l.b16 %v189
  %v966 = vunpack.c.l.b16 %v190
  %v967 = vunpack.c.l.b16 %v191
  %v968 = vunpack.c.l.b16 %v192
  %v969 = vunpack.c.l.b16 %v193
  %v970 = vunpack.c.l.b16 %v194
  %v971 = vunpack.c.l.b16 %v195
  %v972 = vunpack.c.l.b16 %v196
  %v973 = vunpack.c.l.b16 %v197
  %v974 = vunpack.c.l.b16 %v198
  %v975 = vunpack.c.l.b16 %v199
  %v976 = vunpack.c.l.b16 %v200
  %v977 = vunpack.c.l.b16 %v201
  %v978 = vunpack.c.l.b16 %v202
  %v979 = vunpack.c.l.b16 %v203
  %v980 = vunpack.c.l.b16 %v204
  %v981 = vunpack.c.l.b16 %v205
  %v982 = vunpack.c.l.b16 %v206
  %v983 = vunpack.c.l.b16 %v207
  %v984 = vunpack.c.l.b16 %v208
  %v985 = vunpack.c.l.b16 %v209
  %v986 = vunpack.c.l.b16 %v210
  %v987 = vunpack.c.l.b16 %v211
  %v988 = vunpack.c.l.b16 %v212
  %v989 = vunpack.c.l.b16 %v213
  %v990 = vunpack.c.l.b16 %v214
  %v991 = vunpack.c.l.b16 %v215
  %v992 = vunpack.c.l.b16 %v216
  %v993 = vunpack.c.l.b16 %v217
  %v994 = vunpack.c.l.b16 %v218
  %v995 = vunpack.c.l.b16 %v219
  %v996 = vunpack.c.l.b16 %v220
  %v997 = vunpack.c.l.b16 %v221
  %v998 = vunpack.c.l.b16 %v222
  %v999 = vunpack.c.l.b16 %v223
  %v1000 = vunpack.c.l.b16 %v224
  %v1001 = vunpack.c.l.b16 %v225
  %v1002 = vunpack.c.l.b16 %v226
  %v1003 = vunpack.c.l.b16 %v227
  %v1004 = vunpack.c.l.b16 %v228
  %v1005 = vunpack.c.l.b16 %v229
  %v1006 = vunpack.c.l.b16 %v230
  %v1007 = vunpack.c.l.b16 %v231
  %v1008 = vunpack.c.l.b16 %v232
  %v1009 = vunpack.c.l.b16 %v233
  %v1010 = vunpack.c.l.b16 %v234
  %v1011 = vunpack.c.l.b16 %v235
  %v1012 = vunpack.c.l.b16 %v236
  %v1013 = vunpack.c.l.b16 %v237
  %v1014 = vunpack.c.l.b16 %v238
  %v1015 = vunpack.c.l.b16 %v239
  %v1016 = vunpack.c.l.b16 %v240
  %v1017 = vunpack.c.l.b16 %v241
  %v1018 = vunpack.c.l.b16 %v242
  %v1019 = vunpack.c.l.b16 %v243
  %v1020 = vunpack.c.l.b16 %v244
  %v1021 = vunpack.c.l.b16 %v245
  %v1022 = vunpack.c.l.b16 %v246
  %v1023 = vunpack.c.l.b16 %v247
  %v1024 = vunpack.c.l.b16 %v248
  %v1025 = vunpack.c.l.b16 %v249
  %v1026 = vunpack.c.l.b16 %v250
  %v1027 = vunpack.c.l.b16 %v251
  %v1028 = vunpack.c.l.b16 %v252
  %v1029 = vunpack.c.l.b16 %v253
  %v1030 = vunpack.c.l.b16 %v254
  %v1031 = vunpack.c.l.b16 %v255
  %v1032 = vunpack.c.l.b16 %v256
  %v1033 = vpack.c.b16 %v926, %v925
  %v1034 = vpack.c.b16 %v928, %v927
  %v1035 = vpack.c.b16 %v930, %v929
  %v1036 = vpack.c.b16 %v932, %v931
  %v1037 = vpack.c.b16 %v934, %v933
  %v1038 = vpack.c.b16 %v936, %v935
  %v1039 = vpack.c.b16 %v938, %v937
  %v1040 = vpack.c.b16 %v940, %v939
  %v1041 = vpack.c.b16 %v942, %v941
  %v1042 = vpack.c.b16 %v944, %v943
  %v1043 = vpack.c.b16 %v946, %v945
  %v1044 = vpack.c.b16 %v948, %v947
  %v1045 = vpack.c.b16 %v950, %v949
  %v1046 = vpack.c.b16 %v952, %v951
  %v1047 = vpack.c.b16 %v954, %v953
  %v1048 = vpack.c.b16 %v956, %v955
  %v1049 = vpack.c.b16 %v958, %v957
  %v1050 = vpack.c.b16 %v960, %v959
  %v1051 = vpack.c.b16 %v962, %v961
  %v1052 = vpack.c.b16 %v964, %v963
  %v1053 = vpack.c.b16 %v966, %v965
  %v1054 = vpack.c.b16 %v968, %v967
  %v1055 = vpack.c.b16 %v970, %v969
  %v1056 = vpack.c.b16 %v972, %v971
  %v1057 = vpack.c.b16 %v974, %v973
  %v1058 = vpack.c.b16 %v976, %v975
  %v1059 = vpack.c.b16 %v978, %v977
  %v1060 = vpack.c.b16 %v980, %v979
  %v1061 = vpack.c.b16 %v982, %v981
  %v1062 = vpack.c.b16 %v984, %v983
  %v1063 = vpack.c.b16 %v986, %v985
  %v1064 = vpack.c.b16 %v988, %v987
  %v1065 = vpack.c.b16 %v990, %v989
  %v1066 = vpack.c.b16 %v992, %v991
  %v1067 = vpack.c.b16 %v994, %v993
  %v1068 = vpack.c.b16 %v996, %v995
  %v1069 = vpack.c.b16 %v998, %v997
  %v1070 = vpack.c.b16 %v1000, %v999
  %v1071 = vpack.c.b16 %v1002, %v1001
  %v1072 = vpack.c.b16 %v1004, %v1003
  %v1073 = vpack.c.b16 %v1006, %v1005
  %v1074 = vpack.c.b16 %v1008, %v1007
  %v1075 = vpack.c.b16 %v1010, %v1009
  %v1076 = vpack.c.b16 %v1012, %v1011
  %v1077 = vpack.c.b16 %v1014, %v1013
  %v1078 = vpack.c.b16 %v1016, %v1015
  %v1079 = vpack.c.b16 %v1018, %v1017
  %v1080 = vpack.c.b16 %v1020, %v1019
  %v1081 = vpack.c.b16 %v1022, %v1021
  %v1082 = vpack.c.b16 %v1024, %v1023
  %v1083 = vpack.c.b16 %v1026, %v1025
  %v1084 = vpack.c.b16 %v1028, %v1027
  %v1085 = vpack.c.b16 %v1030, %v1029
  %v1086 = vpack.c.b16 %v1032, %v1031
  %vm1141 = vcmask 785408
  %v1143 = vsel %vm1141, %v615, 0
  %v1146 = vsel %vm1141, %v622, 0
  %v1149 = vsel %vm1141, %v629, 0
  %v1152 = vsel %vm1141, %v636, 0
  %v1155 = vsel %vm1141, %v643, 0
  %v1158 = vsel %vm1141, %v650, 0
  %v1161 = vsel %vm1141, %v657, 0
  %v1164 = vsel %vm1141, %v664, 0
  %v1167 = vsel %vm1141, %v671, 0
  %v1170 = vsel %vm1141, %v678, 0
  %v1173 = vsel %vm1141, %v685, 0
  %v1176 = vsel %vm1141, %v692, 0
  %v1179 = vsel %vm1141, %v699, 0
  %v1182 = vsel %vm1141, %v706, 0
  %v1185 = vsel %vm1141, %v713, 0
  %v1188 = vsel %vm1141, %v720, 0
  %1190 = vmatpush.bf16.msra.mxu0 %v1040
  %1191 = vmatpush.bf16.msra.mxu0 %v1039
  %1192 = vmatpush.bf16.msra.mxu0 %v1038
  %1193 = vmatpush.bf16.msra.mxu0 %v1037
  %1194 = vmatpush.bf16.msra.mxu0 %v1036
  %1195 = vmatpush.bf16.msra.mxu0 %v1035
  %1196 = vmatpush.bf16.msra.mxu0 %v1034
  %1197 = vmatpush.bf16.msra.mxu0 %v1033
  %1198 = vmatmul.bf16.gmra.mxu0 %v609
  %v1199 = vpop.f32.mrf.mxu0
  %v1200 = vadd.f32 0.0, %v1199
  %v1201 = vpop.f32.mrf.mxu0
  %v1202 = vadd.f32 0.0, %v1201
  %1203 = vmatmul.bf16.gmra.mxu0 %v616
  %v1204 = vpop.f32.mrf.mxu0
  %v1205 = vadd.f32 0.0, %v1204
  %v1206 = vpop.f32.mrf.mxu0
  %v1207 = vadd.f32 0.0, %v1206
  %1208 = vmatmul.bf16.gmra.mxu0 %v623
  %v1209 = vpop.f32.mrf.mxu0
  %v1210 = vadd.f32 0.0, %v1209
  %v1211 = vpop.f32.mrf.mxu0
  %v1212 = vadd.f32 0.0, %v1211
  %1213 = vmatmul.bf16.gmra.mxu0 %v630
  %v1214 = vpop.f32.mrf.mxu0
  %v1215 = vadd.f32 0.0, %v1214
  %v1216 = vpop.f32.mrf.mxu0
  %v1217 = vadd.f32 0.0, %v1216
  %1218 = vmatmul.bf16.gmra.mxu0 %v637
  %v1219 = vpop.f32.mrf.mxu0
  %v1220 = vadd.f32 0.0, %v1219
  %v1221 = vpop.f32.mrf.mxu0
  %v1222 = vadd.f32 0.0, %v1221
  %1223 = vmatmul.bf16.gmra.mxu0 %v644
  %v1224 = vpop.f32.mrf.mxu0
  %v1225 = vadd.f32 0.0, %v1224
  %v1226 = vpop.f32.mrf.mxu0
  %v1227 = vadd.f32 0.0, %v1226
  %1228 = vmatmul.bf16.gmra.mxu0 %v651
  %v1229 = vpop.f32.mrf.mxu0
  %v1230 = vadd.f32 0.0, %v1229
  %v1231 = vpop.f32.mrf.mxu0
  %v1232 = vadd.f32 0.0, %v1231
  %1233 = vmatmul.bf16.gmra.mxu0 %v658
  %v1234 = vpop.f32.mrf.mxu0
  %v1235 = vadd.f32 0.0, %v1234
  %v1236 = vpop.f32.mrf.mxu0
  %v1237 = vadd.f32 0.0, %v1236
  %1238 = vmatmul.bf16.gmra.mxu0 %v665
  %v1239 = vpop.f32.mrf.mxu0
  %v1240 = vadd.f32 0.0, %v1239
  %v1241 = vpop.f32.mrf.mxu0
  %v1242 = vadd.f32 0.0, %v1241
  %1243 = vmatmul.bf16.gmra.mxu0 %v672
  %v1244 = vpop.f32.mrf.mxu0
  %v1245 = vadd.f32 0.0, %v1244
  %v1246 = vpop.f32.mrf.mxu0
  %v1247 = vadd.f32 0.0, %v1246
  %1248 = vmatmul.bf16.gmra.mxu0 %v679
  %v1249 = vpop.f32.mrf.mxu0
  %v1250 = vadd.f32 0.0, %v1249
  %v1251 = vpop.f32.mrf.mxu0
  %v1252 = vadd.f32 0.0, %v1251
  %1253 = vmatmul.bf16.gmra.mxu0 %v686
  %v1254 = vpop.f32.mrf.mxu0
  %v1255 = vadd.f32 0.0, %v1254
  %v1256 = vpop.f32.mrf.mxu0
  %v1257 = vadd.f32 0.0, %v1256
  %1258 = vmatmul.bf16.gmra.mxu0 %v693
  %v1259 = vpop.f32.mrf.mxu0
  %v1260 = vadd.f32 0.0, %v1259
  %v1261 = vpop.f32.mrf.mxu0
  %v1262 = vadd.f32 0.0, %v1261
  %1263 = vmatmul.bf16.gmra.mxu0 %v700
  %v1264 = vpop.f32.mrf.mxu0
  %v1265 = vadd.f32 0.0, %v1264
  %v1266 = vpop.f32.mrf.mxu0
  %v1267 = vadd.f32 0.0, %v1266
  %1268 = vmatmul.bf16.gmra.mxu0 %v707
  %v1269 = vpop.f32.mrf.mxu0
  %v1270 = vadd.f32 0.0, %v1269
  %v1271 = vpop.f32.mrf.mxu0
  %v1272 = vadd.f32 0.0, %v1271
  %1273 = vmatmul.bf16.gmra.mxu0 %v714
  %v1274 = vpop.f32.mrf.mxu0
  %v1275 = vadd.f32 0.0, %v1274
  %v1276 = vpop.f32.mrf.mxu0
  %v1277 = vadd.f32 0.0, %v1276
  %1278 = vdwg.mxu0
  %1279 = vmatpush.bf16.msra.mxu0 %v1048
  %1280 = vmatpush.bf16.msra.mxu0 %v1047
  %1281 = vmatpush.bf16.msra.mxu0 %v1046
  %1282 = vmatpush.bf16.msra.mxu0 %v1045
  %1283 = vmatpush.bf16.msra.mxu0 %v1044
  %1284 = vmatpush.bf16.msra.mxu0 %v1043
  %1285 = vmatpush.bf16.msra.mxu0 %v1042
  %1286 = vmatpush.bf16.msra.mxu0 %v1041
  %1287 = vmatmul.bf16.gmra.mxu0 %v610
  %v1288 = vpop.f32.mrf.mxu0
  %v1289 = vadd.f32 %v1200, %v1288
  %v1290 = vpop.f32.mrf.mxu0
  %v1291 = vadd.f32 %v1202, %v1290
  %1292 = vmatmul.bf16.gmra.mxu0 %v617
  %v1293 = vpop.f32.mrf.mxu0
  %v1294 = vadd.f32 %v1205, %v1293
  %v1295 = vpop.f32.mrf.mxu0
  %v1296 = vadd.f32 %v1207, %v1295
  %1297 = vmatmul.bf16.gmra.mxu0 %v624
  %v1298 = vpop.f32.mrf.mxu0
  %v1299 = vadd.f32 %v1210, %v1298
  %v1300 = vpop.f32.mrf.mxu0
  %v1301 = vadd.f32 %v1212, %v1300
  %1302 = vmatmul.bf16.gmra.mxu0 %v631
  %v1303 = vpop.f32.mrf.mxu0
  %v1304 = vadd.f32 %v1215, %v1303
  %v1305 = vpop.f32.mrf.mxu0
  %v1306 = vadd.f32 %v1217, %v1305
  %1307 = vmatmul.bf16.gmra.mxu0 %v638
  %v1308 = vpop.f32.mrf.mxu0
  %v1309 = vadd.f32 %v1220, %v1308
  %v1310 = vpop.f32.mrf.mxu0
  %v1311 = vadd.f32 %v1222, %v1310
  %1312 = vmatmul.bf16.gmra.mxu0 %v645
  %v1313 = vpop.f32.mrf.mxu0
  %v1314 = vadd.f32 %v1225, %v1313
  %v1315 = vpop.f32.mrf.mxu0
  %v1316 = vadd.f32 %v1227, %v1315
  %1317 = vmatmul.bf16.gmra.mxu0 %v652
  %v1318 = vpop.f32.mrf.mxu0
  %v1319 = vadd.f32 %v1230, %v1318
  %v1320 = vpop.f32.mrf.mxu0
  %v1321 = vadd.f32 %v1232, %v1320
  %1322 = vmatmul.bf16.gmra.mxu0 %v659
  %v1323 = vpop.f32.mrf.mxu0
  %v1324 = vadd.f32 %v1235, %v1323
  %v1325 = vpop.f32.mrf.mxu0
  %v1326 = vadd.f32 %v1237, %v1325
  %1327 = vmatmul.bf16.gmra.mxu0 %v666
  %v1328 = vpop.f32.mrf.mxu0
  %v1329 = vadd.f32 %v1240, %v1328
  %v1330 = vpop.f32.mrf.mxu0
  %v1331 = vadd.f32 %v1242, %v1330
  %1332 = vmatmul.bf16.gmra.mxu0 %v673
  %v1333 = vpop.f32.mrf.mxu0
  %v1334 = vadd.f32 %v1245, %v1333
  %v1335 = vpop.f32.mrf.mxu0
  %v1336 = vadd.f32 %v1247, %v1335
  %1337 = vmatmul.bf16.gmra.mxu0 %v680
  %v1338 = vpop.f32.mrf.mxu0
  %v1339 = vadd.f32 %v1250, %v1338
  %v1340 = vpop.f32.mrf.mxu0
  %v1341 = vadd.f32 %v1252, %v1340
  %1342 = vmatmul.bf16.gmra.mxu0 %v687
  %v1343 = vpop.f32.mrf.mxu0
  %v1344 = vadd.f32 %v1255, %v1343
  %v1345 = vpop.f32.mrf.mxu0
  %v1346 = vadd.f32 %v1257, %v1345
  %1347 = vmatmul.bf16.gmra.mxu0 %v694
  %v1348 = vpop.f32.mrf.mxu0
  %v1349 = vadd.f32 %v1260, %v1348
  %v1350 = vpop.f32.mrf.mxu0
  %v1351 = vadd.f32 %v1262, %v1350
  %1352 = vmatmul.bf16.gmra.mxu0 %v701
  %v1353 = vpop.f32.mrf.mxu0
  %v1354 = vadd.f32 %v1265, %v1353
  %v1355 = vpop.f32.mrf.mxu0
  %v1356 = vadd.f32 %v1267, %v1355
  %1357 = vmatmul.bf16.gmra.mxu0 %v708
  %v1358 = vpop.f32.mrf.mxu0
  %v1359 = vadd.f32 %v1270, %v1358
  %v1360 = vpop.f32.mrf.mxu0
  %v1361 = vadd.f32 %v1272, %v1360
  %1362 = vmatmul.bf16.gmra.mxu0 %v715
  %v1363 = vpop.f32.mrf.mxu0
  %v1364 = vadd.f32 %v1275, %v1363
  %v1365 = vpop.f32.mrf.mxu0
  %v1366 = vadd.f32 %v1277, %v1365
  %1367 = vdwg.mxu0
  %1368 = vmatpush.bf16.msra.mxu0 %v1056
  %1369 = vmatpush.bf16.msra.mxu0 %v1055
  %1370 = vmatpush.bf16.msra.mxu0 %v1054
  %1371 = vmatpush.bf16.msra.mxu0 %v1053
  %1372 = vmatpush.bf16.msra.mxu0 %v1052
  %1373 = vmatpush.bf16.msra.mxu0 %v1051
  %1374 = vmatpush.bf16.msra.mxu0 %v1050
  %1375 = vmatpush.bf16.msra.mxu0 %v1049
  %1376 = vmatmul.bf16.gmra.mxu0 %v611
  %v1377 = vpop.f32.mrf.mxu0
  %v1378 = vadd.f32 %v1289, %v1377
  %v1379 = vpop.f32.mrf.mxu0
  %v1380 = vadd.f32 %v1291, %v1379
  %1381 = vmatmul.bf16.gmra.mxu0 %v618
  %v1382 = vpop.f32.mrf.mxu0
  %v1383 = vadd.f32 %v1294, %v1382
  %v1384 = vpop.f32.mrf.mxu0
  %v1385 = vadd.f32 %v1296, %v1384
  %1386 = vmatmul.bf16.gmra.mxu0 %v625
  %v1387 = vpop.f32.mrf.mxu0
  %v1388 = vadd.f32 %v1299, %v1387
  %v1389 = vpop.f32.mrf.mxu0
  %v1390 = vadd.f32 %v1301, %v1389
  %1391 = vmatmul.bf16.gmra.mxu0 %v632
  %v1392 = vpop.f32.mrf.mxu0
  %v1393 = vadd.f32 %v1304, %v1392
  %v1394 = vpop.f32.mrf.mxu0
  %v1395 = vadd.f32 %v1306, %v1394
  %1396 = vmatmul.bf16.gmra.mxu0 %v639
  %v1397 = vpop.f32.mrf.mxu0
  %v1398 = vadd.f32 %v1309, %v1397
  %v1399 = vpop.f32.mrf.mxu0
  %v1400 = vadd.f32 %v1311, %v1399
  %1401 = vmatmul.bf16.gmra.mxu0 %v646
  %v1402 = vpop.f32.mrf.mxu0
  %v1403 = vadd.f32 %v1314, %v1402
  %v1404 = vpop.f32.mrf.mxu0
  %v1405 = vadd.f32 %v1316, %v1404
  %1406 = vmatmul.bf16.gmra.mxu0 %v653
  %v1407 = vpop.f32.mrf.mxu0
  %v1408 = vadd.f32 %v1319, %v1407
  %v1409 = vpop.f32.mrf.mxu0
  %v1410 = vadd.f32 %v1321, %v1409
  %1411 = vmatmul.bf16.gmra.mxu0 %v660
  %v1412 = vpop.f32.mrf.mxu0
  %v1413 = vadd.f32 %v1324, %v1412
  %v1414 = vpop.f32.mrf.mxu0
  %v1415 = vadd.f32 %v1326, %v1414
  %1416 = vmatmul.bf16.gmra.mxu0 %v667
  %v1417 = vpop.f32.mrf.mxu0
  %v1418 = vadd.f32 %v1329, %v1417
  %v1419 = vpop.f32.mrf.mxu0
  %v1420 = vadd.f32 %v1331, %v1419
  %1421 = vmatmul.bf16.gmra.mxu0 %v674
  %v1422 = vpop.f32.mrf.mxu0
  %v1423 = vadd.f32 %v1334, %v1422
  %v1424 = vpop.f32.mrf.mxu0
  %v1425 = vadd.f32 %v1336, %v1424
  %1426 = vmatmul.bf16.gmra.mxu0 %v681
  %v1427 = vpop.f32.mrf.mxu0
  %v1428 = vadd.f32 %v1339, %v1427
  %v1429 = vpop.f32.mrf.mxu0
  %v1430 = vadd.f32 %v1341, %v1429
  %1431 = vmatmul.bf16.gmra.mxu0 %v688
  %v1432 = vpop.f32.mrf.mxu0
  %v1433 = vadd.f32 %v1344, %v1432
  %v1434 = vpop.f32.mrf.mxu0
  %v1435 = vadd.f32 %v1346, %v1434
  %1436 = vmatmul.bf16.gmra.mxu0 %v695
  %v1437 = vpop.f32.mrf.mxu0
  %v1438 = vadd.f32 %v1349, %v1437
  %v1439 = vpop.f32.mrf.mxu0
  %v1440 = vadd.f32 %v1351, %v1439
  %1441 = vmatmul.bf16.gmra.mxu0 %v702
  %v1442 = vpop.f32.mrf.mxu0
  %v1443 = vadd.f32 %v1354, %v1442
  %v1444 = vpop.f32.mrf.mxu0
  %v1445 = vadd.f32 %v1356, %v1444
  %1446 = vmatmul.bf16.gmra.mxu0 %v709
  %v1447 = vpop.f32.mrf.mxu0
  %v1448 = vadd.f32 %v1359, %v1447
  %v1449 = vpop.f32.mrf.mxu0
  %v1450 = vadd.f32 %v1361, %v1449
  %1451 = vmatmul.bf16.gmra.mxu0 %v716
  %v1452 = vpop.f32.mrf.mxu0
  %v1453 = vadd.f32 %v1364, %v1452
  %v1454 = vpop.f32.mrf.mxu0
  %v1455 = vadd.f32 %v1366, %v1454
  %1456 = vdwg.mxu0
  %1457 = vmatpush.bf16.msra.mxu0 %v1064
  %1458 = vmatpush.bf16.msra.mxu0 %v1063
  %1459 = vmatpush.bf16.msra.mxu0 %v1062
  %1460 = vmatpush.bf16.msra.mxu0 %v1061
  %1461 = vmatpush.bf16.msra.mxu0 %v1060
  %1462 = vmatpush.bf16.msra.mxu0 %v1059
  %1463 = vmatpush.bf16.msra.mxu0 %v1058
  %1464 = vmatpush.bf16.msra.mxu0 %v1057
  %1465 = vmatmul.bf16.gmra.mxu0 %v612
  %v1466 = vpop.f32.mrf.mxu0
  %v1467 = vadd.f32 %v1378, %v1466
  %v1468 = vpop.f32.mrf.mxu0
  %v1469 = vadd.f32 %v1380, %v1468
  %1470 = vmatmul.bf16.gmra.mxu0 %v619
  %v1471 = vpop.f32.mrf.mxu0
  %v1472 = vadd.f32 %v1383, %v1471
  %v1473 = vpop.f32.mrf.mxu0
  %v1474 = vadd.f32 %v1385, %v1473
  %1475 = vmatmul.bf16.gmra.mxu0 %v626
  %v1476 = vpop.f32.mrf.mxu0
  %v1477 = vadd.f32 %v1388, %v1476
  %v1478 = vpop.f32.mrf.mxu0
  %v1479 = vadd.f32 %v1390, %v1478
  %1480 = vmatmul.bf16.gmra.mxu0 %v633
  %v1481 = vpop.f32.mrf.mxu0
  %v1482 = vadd.f32 %v1393, %v1481
  %v1483 = vpop.f32.mrf.mxu0
  %v1484 = vadd.f32 %v1395, %v1483
  %1485 = vmatmul.bf16.gmra.mxu0 %v640
  %v1486 = vpop.f32.mrf.mxu0
  %v1487 = vadd.f32 %v1398, %v1486
  %v1488 = vpop.f32.mrf.mxu0
  %v1489 = vadd.f32 %v1400, %v1488
  %1490 = vmatmul.bf16.gmra.mxu0 %v647
  %v1491 = vpop.f32.mrf.mxu0
  %v1492 = vadd.f32 %v1403, %v1491
  %v1493 = vpop.f32.mrf.mxu0
  %v1494 = vadd.f32 %v1405, %v1493
  %1495 = vmatmul.bf16.gmra.mxu0 %v654
  %v1496 = vpop.f32.mrf.mxu0
  %v1497 = vadd.f32 %v1408, %v1496
  %v1498 = vpop.f32.mrf.mxu0
  %v1499 = vadd.f32 %v1410, %v1498
  %1500 = vmatmul.bf16.gmra.mxu0 %v661
  %v1501 = vpop.f32.mrf.mxu0
  %v1502 = vadd.f32 %v1413, %v1501
  %v1503 = vpop.f32.mrf.mxu0
  %v1504 = vadd.f32 %v1415, %v1503
  %1505 = vmatmul.bf16.gmra.mxu0 %v668
  %v1506 = vpop.f32.mrf.mxu0
  %v1507 = vadd.f32 %v1418, %v1506
  %v1508 = vpop.f32.mrf.mxu0
  %v1509 = vadd.f32 %v1420, %v1508
  %1510 = vmatmul.bf16.gmra.mxu0 %v675
  %v1511 = vpop.f32.mrf.mxu0
  %v1512 = vadd.f32 %v1423, %v1511
  %v1513 = vpop.f32.mrf.mxu0
  %v1514 = vadd.f32 %v1425, %v1513
  %1515 = vmatmul.bf16.gmra.mxu0 %v682
  %v1516 = vpop.f32.mrf.mxu0
  %v1517 = vadd.f32 %v1428, %v1516
  %v1518 = vpop.f32.mrf.mxu0
  %v1519 = vadd.f32 %v1430, %v1518
  %1520 = vmatmul.bf16.gmra.mxu0 %v689
  %v1521 = vpop.f32.mrf.mxu0
  %v1522 = vadd.f32 %v1433, %v1521
  %v1523 = vpop.f32.mrf.mxu0
  %v1524 = vadd.f32 %v1435, %v1523
  %1525 = vmatmul.bf16.gmra.mxu0 %v696
  %v1526 = vpop.f32.mrf.mxu0
  %v1527 = vadd.f32 %v1438, %v1526
  %v1528 = vpop.f32.mrf.mxu0
  %v1529 = vadd.f32 %v1440, %v1528
  %1530 = vmatmul.bf16.gmra.mxu0 %v703
  %v1531 = vpop.f32.mrf.mxu0
  %v1532 = vadd.f32 %v1443, %v1531
  %v1533 = vpop.f32.mrf.mxu0
  %v1534 = vadd.f32 %v1445, %v1533
  %1535 = vmatmul.bf16.gmra.mxu0 %v710
  %v1536 = vpop.f32.mrf.mxu0
  %v1537 = vadd.f32 %v1448, %v1536
  %v1538 = vpop.f32.mrf.mxu0
  %v1539 = vadd.f32 %v1450, %v1538
  %1540 = vmatmul.bf16.gmra.mxu0 %v717
  %v1541 = vpop.f32.mrf.mxu0
  %v1542 = vadd.f32 %v1453, %v1541
  %v1543 = vpop.f32.mrf.mxu0
  %v1544 = vadd.f32 %v1455, %v1543
  %1545 = vdwg.mxu0
  %1546 = vmatpush.bf16.msra.mxu0 %v1072
  %1547 = vmatpush.bf16.msra.mxu0 %v1071
  %1548 = vmatpush.bf16.msra.mxu0 %v1070
  %1549 = vmatpush.bf16.msra.mxu0 %v1069
  %1550 = vmatpush.bf16.msra.mxu0 %v1068
  %1551 = vmatpush.bf16.msra.mxu0 %v1067
  %1552 = vmatpush.bf16.msra.mxu0 %v1066
  %1553 = vmatpush.bf16.msra.mxu0 %v1065
  %1554 = vmatmul.bf16.gmra.mxu0 %v613
  %v1555 = vpop.f32.mrf.mxu0
  %v1556 = vadd.f32 %v1467, %v1555
  %v1557 = vpop.f32.mrf.mxu0
  %v1558 = vadd.f32 %v1469, %v1557
  %1559 = vmatmul.bf16.gmra.mxu0 %v620
  %v1560 = vpop.f32.mrf.mxu0
  %v1561 = vadd.f32 %v1472, %v1560
  %v1562 = vpop.f32.mrf.mxu0
  %v1563 = vadd.f32 %v1474, %v1562
  %1564 = vmatmul.bf16.gmra.mxu0 %v627
  %v1565 = vpop.f32.mrf.mxu0
  %v1566 = vadd.f32 %v1477, %v1565
  %v1567 = vpop.f32.mrf.mxu0
  %v1568 = vadd.f32 %v1479, %v1567
  %1569 = vmatmul.bf16.gmra.mxu0 %v634
  %v1570 = vpop.f32.mrf.mxu0
  %v1571 = vadd.f32 %v1482, %v1570
  %v1572 = vpop.f32.mrf.mxu0
  %v1573 = vadd.f32 %v1484, %v1572
  %1574 = vmatmul.bf16.gmra.mxu0 %v641
  %v1575 = vpop.f32.mrf.mxu0
  %v1576 = vadd.f32 %v1487, %v1575
  %v1577 = vpop.f32.mrf.mxu0
  %v1578 = vadd.f32 %v1489, %v1577
  %1579 = vmatmul.bf16.gmra.mxu0 %v648
  %v1580 = vpop.f32.mrf.mxu0
  %v1581 = vadd.f32 %v1492, %v1580
  %v1582 = vpop.f32.mrf.mxu0
  %v1583 = vadd.f32 %v1494, %v1582
  %1584 = vmatmul.bf16.gmra.mxu0 %v655
  %v1585 = vpop.f32.mrf.mxu0
  %v1586 = vadd.f32 %v1497, %v1585
  %v1587 = vpop.f32.mrf.mxu0
  %v1588 = vadd.f32 %v1499, %v1587
  %1589 = vmatmul.bf16.gmra.mxu0 %v662
  %v1590 = vpop.f32.mrf.mxu0
  %v1591 = vadd.f32 %v1502, %v1590
  %v1592 = vpop.f32.mrf.mxu0
  %v1593 = vadd.f32 %v1504, %v1592
  %1594 = vmatmul.bf16.gmra.mxu0 %v669
  %v1595 = vpop.f32.mrf.mxu0
  %v1596 = vadd.f32 %v1507, %v1595
  %v1597 = vpop.f32.mrf.mxu0
  %v1598 = vadd.f32 %v1509, %v1597
  %1599 = vmatmul.bf16.gmra.mxu0 %v676
  %v1600 = vpop.f32.mrf.mxu0
  %v1601 = vadd.f32 %v1512, %v1600
  %v1602 = vpop.f32.mrf.mxu0
  %v1603 = vadd.f32 %v1514, %v1602
  %1604 = vmatmul.bf16.gmra.mxu0 %v683
  %v1605 = vpop.f32.mrf.mxu0
  %v1606 = vadd.f32 %v1517, %v1605
  %v1607 = vpop.f32.mrf.mxu0
  %v1608 = vadd.f32 %v1519, %v1607
  %1609 = vmatmul.bf16.gmra.mxu0 %v690
  %v1610 = vpop.f32.mrf.mxu0
  %v1611 = vadd.f32 %v1522, %v1610
  %v1612 = vpop.f32.mrf.mxu0
  %v1613 = vadd.f32 %v1524, %v1612
  %1614 = vmatmul.bf16.gmra.mxu0 %v697
  %v1615 = vpop.f32.mrf.mxu0
  %v1616 = vadd.f32 %v1527, %v1615
  %v1617 = vpop.f32.mrf.mxu0
  %v1618 = vadd.f32 %v1529, %v1617
  %1619 = vmatmul.bf16.gmra.mxu0 %v704
  %v1620 = vpop.f32.mrf.mxu0
  %v1621 = vadd.f32 %v1532, %v1620
  %v1622 = vpop.f32.mrf.mxu0
  %v1623 = vadd.f32 %v1534, %v1622
  %1624 = vmatmul.bf16.gmra.mxu0 %v711
  %v1625 = vpop.f32.mrf.mxu0
  %v1626 = vadd.f32 %v1537, %v1625
  %v1627 = vpop.f32.mrf.mxu0
  %v1628 = vadd.f32 %v1539, %v1627
  %1629 = vmatmul.bf16.gmra.mxu0 %v718
  %v1630 = vpop.f32.mrf.mxu0
  %v1631 = vadd.f32 %v1542, %v1630
  %v1632 = vpop.f32.mrf.mxu0
  %v1633 = vadd.f32 %v1544, %v1632
  %1634 = vdwg.mxu0
  %1635 = vmatpush.bf16.msra.mxu0 %v1080
  %1636 = vmatpush.bf16.msra.mxu0 %v1079
  %1637 = vmatpush.bf16.msra.mxu0 %v1078
  %1638 = vmatpush.bf16.msra.mxu0 %v1077
  %1639 = vmatpush.bf16.msra.mxu0 %v1076
  %1640 = vmatpush.bf16.msra.mxu0 %v1075
  %1641 = vmatpush.bf16.msra.mxu0 %v1074
  %1642 = vmatpush.bf16.msra.mxu0 %v1073
  %1643 = vmatmul.bf16.gmra.mxu0 %v614
  %v1644 = vpop.f32.mrf.mxu0
  %v1645 = vadd.f32 %v1556, %v1644
  %v1646 = vpop.f32.mrf.mxu0
  %v1647 = vadd.f32 %v1558, %v1646
  %1648 = vmatmul.bf16.gmra.mxu0 %v621
  %v1649 = vpop.f32.mrf.mxu0
  %v1650 = vadd.f32 %v1561, %v1649
  %v1651 = vpop.f32.mrf.mxu0
  %v1652 = vadd.f32 %v1563, %v1651
  %1653 = vmatmul.bf16.gmra.mxu0 %v628
  %v1654 = vpop.f32.mrf.mxu0
  %v1655 = vadd.f32 %v1566, %v1654
  %v1656 = vpop.f32.mrf.mxu0
  %v1657 = vadd.f32 %v1568, %v1656
  %1658 = vmatmul.bf16.gmra.mxu0 %v635
  %v1659 = vpop.f32.mrf.mxu0
  %v1660 = vadd.f32 %v1571, %v1659
  %v1661 = vpop.f32.mrf.mxu0
  %v1662 = vadd.f32 %v1573, %v1661
  %1663 = vmatmul.bf16.gmra.mxu0 %v642
  %v1664 = vpop.f32.mrf.mxu0
  %v1665 = vadd.f32 %v1576, %v1664
  %v1666 = vpop.f32.mrf.mxu0
  %v1667 = vadd.f32 %v1578, %v1666
  %1668 = vmatmul.bf16.gmra.mxu0 %v649
  %v1669 = vpop.f32.mrf.mxu0
  %v1670 = vadd.f32 %v1581, %v1669
  %v1671 = vpop.f32.mrf.mxu0
  %v1672 = vadd.f32 %v1583, %v1671
  %1673 = vmatmul.bf16.gmra.mxu0 %v656
  %v1674 = vpop.f32.mrf.mxu0
  %v1675 = vadd.f32 %v1586, %v1674
  %v1676 = vpop.f32.mrf.mxu0
  %v1677 = vadd.f32 %v1588, %v1676
  %1678 = vmatmul.bf16.gmra.mxu0 %v663
  %v1679 = vpop.f32.mrf.mxu0
  %v1680 = vadd.f32 %v1591, %v1679
  %v1681 = vpop.f32.mrf.mxu0
  %v1682 = vadd.f32 %v1593, %v1681
  %1683 = vmatmul.bf16.gmra.mxu0 %v670
  %v1684 = vpop.f32.mrf.mxu0
  %v1685 = vadd.f32 %v1596, %v1684
  %v1686 = vpop.f32.mrf.mxu0
  %v1687 = vadd.f32 %v1598, %v1686
  %1688 = vmatmul.bf16.gmra.mxu0 %v677
  %v1689 = vpop.f32.mrf.mxu0
  %v1690 = vadd.f32 %v1601, %v1689
  %v1691 = vpop.f32.mrf.mxu0
  %v1692 = vadd.f32 %v1603, %v1691
  %1693 = vmatmul.bf16.gmra.mxu0 %v684
  %v1694 = vpop.f32.mrf.mxu0
  %v1695 = vadd.f32 %v1606, %v1694
  %v1696 = vpop.f32.mrf.mxu0
  %v1697 = vadd.f32 %v1608, %v1696
  %1698 = vmatmul.bf16.gmra.mxu0 %v691
  %v1699 = vpop.f32.mrf.mxu0
  %v1700 = vadd.f32 %v1611, %v1699
  %v1701 = vpop.f32.mrf.mxu0
  %v1702 = vadd.f32 %v1613, %v1701
  %1703 = vmatmul.bf16.gmra.mxu0 %v698
  %v1704 = vpop.f32.mrf.mxu0
  %v1705 = vadd.f32 %v1616, %v1704
  %v1706 = vpop.f32.mrf.mxu0
  %v1707 = vadd.f32 %v1618, %v1706
  %1708 = vmatmul.bf16.gmra.mxu0 %v705
  %v1709 = vpop.f32.mrf.mxu0
  %v1710 = vadd.f32 %v1621, %v1709
  %v1711 = vpop.f32.mrf.mxu0
  %v1712 = vadd.f32 %v1623, %v1711
  %1713 = vmatmul.bf16.gmra.mxu0 %v712
  %v1714 = vpop.f32.mrf.mxu0
  %v1715 = vadd.f32 %v1626, %v1714
  %v1716 = vpop.f32.mrf.mxu0
  %v1717 = vadd.f32 %v1628, %v1716
  %1718 = vmatmul.bf16.gmra.mxu0 %v719
  %v1719 = vpop.f32.mrf.mxu0
  %v1720 = vadd.f32 %v1631, %v1719
  %v1721 = vpop.f32.mrf.mxu0
  %v1722 = vadd.f32 %v1633, %v1721
  %1723 = vdwg.mxu0
  %1724 = vmatpush.bf16.msra.mxu0 0
  %1725 = vmatpush.bf16.msra.mxu0 0
  %1726 = vmatpush.bf16.msra.mxu0 %v1086
  %1727 = vmatpush.bf16.msra.mxu0 %v1085
  %1728 = vmatpush.bf16.msra.mxu0 %v1084
  %1729 = vmatpush.bf16.msra.mxu0 %v1083
  %1730 = vmatpush.bf16.msra.mxu0 %v1082
  %1731 = vmatpush.bf16.msra.mxu0 %v1081
  %1732 = vmatmul.bf16.gmra.mxu0 %v1143
  %v1733 = vpop.f32.mrf.mxu0
  %v1734 = vadd.f32 %v1645, %v1733
  %v1735 = vpop.f32.mrf.mxu0
  %v1736 = vadd.f32 %v1647, %v1735
  %1737 = vmatmul.bf16.gmra.mxu0 %v1146
  %v1738 = vpop.f32.mrf.mxu0
  %v1739 = vadd.f32 %v1650, %v1738
  %v1740 = vpop.f32.mrf.mxu0
  %v1741 = vadd.f32 %v1652, %v1740
  %1742 = vmatmul.bf16.gmra.mxu0 %v1149
  %v1743 = vpop.f32.mrf.mxu0
  %v1744 = vadd.f32 %v1655, %v1743
  %v1745 = vpop.f32.mrf.mxu0
  %v1746 = vadd.f32 %v1657, %v1745
  %1747 = vmatmul.bf16.gmra.mxu0 %v1152
  %v1748 = vpop.f32.mrf.mxu0
  %v1749 = vadd.f32 %v1660, %v1748
  %v1750 = vpop.f32.mrf.mxu0
  %v1751 = vadd.f32 %v1662, %v1750
  %1752 = vmatmul.bf16.gmra.mxu0 %v1155
  %v1753 = vpop.f32.mrf.mxu0
  %v1754 = vadd.f32 %v1665, %v1753
  %v1755 = vpop.f32.mrf.mxu0
  %v1756 = vadd.f32 %v1667, %v1755
  %1757 = vmatmul.bf16.gmra.mxu0 %v1158
  %v1758 = vpop.f32.mrf.mxu0
  %v1759 = vadd.f32 %v1670, %v1758
  %v1760 = vpop.f32.mrf.mxu0
  %v1761 = vadd.f32 %v1672, %v1760
  %1762 = vmatmul.bf16.gmra.mxu0 %v1161
  %v1763 = vpop.f32.mrf.mxu0
  %v1764 = vadd.f32 %v1675, %v1763
  %v1765 = vpop.f32.mrf.mxu0
  %v1766 = vadd.f32 %v1677, %v1765
  %1767 = vmatmul.bf16.gmra.mxu0 %v1164
  %v1768 = vpop.f32.mrf.mxu0
  %v1769 = vadd.f32 %v1680, %v1768
  %v1770 = vpop.f32.mrf.mxu0
  %v1771 = vadd.f32 %v1682, %v1770
  %1772 = vmatmul.bf16.gmra.mxu0 %v1167
  %v1773 = vpop.f32.mrf.mxu0
  %v1774 = vadd.f32 %v1685, %v1773
  %v1775 = vpop.f32.mrf.mxu0
  %v1776 = vadd.f32 %v1687, %v1775
  %1777 = vmatmul.bf16.gmra.mxu0 %v1170
  %v1778 = vpop.f32.mrf.mxu0
  %v1779 = vadd.f32 %v1690, %v1778
  %v1780 = vpop.f32.mrf.mxu0
  %v1781 = vadd.f32 %v1692, %v1780
  %1782 = vmatmul.bf16.gmra.mxu0 %v1173
  %v1783 = vpop.f32.mrf.mxu0
  %v1784 = vadd.f32 %v1695, %v1783
  %v1785 = vpop.f32.mrf.mxu0
  %v1786 = vadd.f32 %v1697, %v1785
  %1787 = vmatmul.bf16.gmra.mxu0 %v1176
  %v1788 = vpop.f32.mrf.mxu0
  %v1789 = vadd.f32 %v1700, %v1788
  %v1790 = vpop.f32.mrf.mxu0
  %v1791 = vadd.f32 %v1702, %v1790
  %1792 = vmatmul.bf16.gmra.mxu0 %v1179
  %v1793 = vpop.f32.mrf.mxu0
  %v1794 = vadd.f32 %v1705, %v1793
  %v1795 = vpop.f32.mrf.mxu0
  %v1796 = vadd.f32 %v1707, %v1795
  %1797 = vmatmul.bf16.gmra.mxu0 %v1182
  %v1798 = vpop.f32.mrf.mxu0
  %v1799 = vadd.f32 %v1710, %v1798
  %v1800 = vpop.f32.mrf.mxu0
  %v1801 = vadd.f32 %v1712, %v1800
  %1802 = vmatmul.bf16.gmra.mxu0 %v1185
  %v1803 = vpop.f32.mrf.mxu0
  %v1804 = vadd.f32 %v1715, %v1803
  %v1805 = vpop.f32.mrf.mxu0
  %v1806 = vadd.f32 %v1717, %v1805
  %1807 = vmatmul.bf16.gmra.mxu0 %v1188
  %v1808 = vpop.f32.mrf.mxu0
  %v1809 = vadd.f32 %v1720, %v1808
  %v1810 = vpop.f32.mrf.mxu0
  %v1811 = vadd.f32 %v1722, %v1810
  %1812 = vdwg.mxu0
  %vm1813 = vcmask 261120
  %v1814 = vsel %vm1813, %v1734, 0.0
  %1815 = vadd.xlane.f32.xlu0 %v1814
  %v1816 = vpop.xlane.xlu0 %1815
  %v1817 = vsel %vm1813, %v1736, 0.0
  %1818 = vadd.xlane.f32.xlu0 %v1817
  %v1819 = vpop.xlane.xlu0 %1818
  %v1820 = vsel %vm1813, %v1739, 0.0
  %1821 = vadd.xlane.f32.xlu0 %v1820
  %v1822 = vpop.xlane.xlu0 %1821
  %v1823 = vsel %vm1813, %v1741, 0.0
  %1824 = vadd.xlane.f32.xlu0 %v1823
  %v1825 = vpop.xlane.xlu0 %1824
  %v1826 = vsel %vm1813, %v1744, 0.0
  %1827 = vadd.xlane.f32.xlu0 %v1826
  %v1828 = vpop.xlane.xlu0 %1827
  %v1829 = vsel %vm1813, %v1746, 0.0
  %1830 = vadd.xlane.f32.xlu0 %v1829
  %v1831 = vpop.xlane.xlu0 %1830
  %v1832 = vsel %vm1813, %v1749, 0.0
  %1833 = vadd.xlane.f32.xlu0 %v1832
  %v1834 = vpop.xlane.xlu0 %1833
  %v1835 = vsel %vm1813, %v1751, 0.0
  %1836 = vadd.xlane.f32.xlu0 %v1835
  %v1837 = vpop.xlane.xlu0 %1836
  %v1838 = vsel %vm1813, %v1754, 0.0
  %1839 = vadd.xlane.f32.xlu0 %v1838
  %v1840 = vpop.xlane.xlu0 %1839
  %v1841 = vsel %vm1813, %v1756, 0.0
  %1842 = vadd.xlane.f32.xlu0 %v1841
  %v1843 = vpop.xlane.xlu0 %1842
  %v1844 = vsel %vm1813, %v1759, 0.0
  %1845 = vadd.xlane.f32.xlu0 %v1844
  %v1846 = vpop.xlane.xlu0 %1845
  %v1847 = vsel %vm1813, %v1761, 0.0
  %1848 = vadd.xlane.f32.xlu0 %v1847
  %v1849 = vpop.xlane.xlu0 %1848
  %v1850 = vsel %vm1813, %v1764, 0.0
  %1851 = vadd.xlane.f32.xlu0 %v1850
  %v1852 = vpop.xlane.xlu0 %1851
  %v1853 = vsel %vm1813, %v1766, 0.0
  %1854 = vadd.xlane.f32.xlu0 %v1853
  %v1855 = vpop.xlane.xlu0 %1854
  %v1856 = vsel %vm1813, %v1769, 0.0
  %1857 = vadd.xlane.f32.xlu0 %v1856
  %v1858 = vpop.xlane.xlu0 %1857
  %v1859 = vsel %vm1813, %v1771, 0.0
  %1860 = vadd.xlane.f32.xlu0 %v1859
  %v1861 = vpop.xlane.xlu0 %1860
  %v1862 = vsel %vm1813, %v1774, 0.0
  %1863 = vadd.xlane.f32.xlu0 %v1862
  %v1864 = vpop.xlane.xlu0 %1863
  %v1865 = vsel %vm1813, %v1776, 0.0
  %1866 = vadd.xlane.f32.xlu0 %v1865
  %v1867 = vpop.xlane.xlu0 %1866
  %v1868 = vsel %vm1813, %v1779, 0.0
  %1869 = vadd.xlane.f32.xlu0 %v1868
  %v1870 = vpop.xlane.xlu0 %1869
  %v1871 = vsel %vm1813, %v1781, 0.0
  %1872 = vadd.xlane.f32.xlu0 %v1871
  %v1873 = vpop.xlane.xlu0 %1872
  %v1874 = vsel %vm1813, %v1784, 0.0
  %1875 = vadd.xlane.f32.xlu0 %v1874
  %v1876 = vpop.xlane.xlu0 %1875
  %v1877 = vsel %vm1813, %v1786, 0.0
  %1878 = vadd.xlane.f32.xlu0 %v1877
  %v1879 = vpop.xlane.xlu0 %1878
  %v1880 = vsel %vm1813, %v1789, 0.0
  %1881 = vadd.xlane.f32.xlu0 %v1880
  %v1882 = vpop.xlane.xlu0 %1881
  %v1883 = vsel %vm1813, %v1791, 0.0
  %1884 = vadd.xlane.f32.xlu0 %v1883
  %v1885 = vpop.xlane.xlu0 %1884
  %v1886 = vsel %vm1813, %v1794, 0.0
  %1887 = vadd.xlane.f32.xlu0 %v1886
  %v1888 = vpop.xlane.xlu0 %1887
  %v1889 = vsel %vm1813, %v1796, 0.0
  %1890 = vadd.xlane.f32.xlu0 %v1889
  %v1891 = vpop.xlane.xlu0 %1890
  %v1892 = vsel %vm1813, %v1799, 0.0
  %1893 = vadd.xlane.f32.xlu0 %v1892
  %v1894 = vpop.xlane.xlu0 %1893
  %v1895 = vsel %vm1813, %v1801, 0.0
  %1896 = vadd.xlane.f32.xlu0 %v1895
  %v1897 = vpop.xlane.xlu0 %1896
  %v1898 = vsel %vm1813, %v1804, 0.0
  %1899 = vadd.xlane.f32.xlu0 %v1898
  %v1900 = vpop.xlane.xlu0 %1899
  %v1901 = vsel %vm1813, %v1806, 0.0
  %1902 = vadd.xlane.f32.xlu0 %v1901
  %v1903 = vpop.xlane.xlu0 %1902
  %v1904 = vsel %vm1813, %v1809, 0.0
  %1905 = vadd.xlane.f32.xlu0 %v1904
  %v1906 = vpop.xlane.xlu0 %1905
  %v1907 = vsel %vm1813, %v1811, 0.0
  %1908 = vadd.xlane.f32.xlu0 %v1907
  %v1909 = vpop.xlane.xlu0 %1908
  %v1910 = vrcp.pop 32.0
  %v1911 = vmul.f32 32.0, %v1910
  %v1912 = vsub.f32 1.0, %v1911
  %v1913 = vmul.f32 %v1910, %v1912
  %v1914 = vadd.f32 %v1910, %v1913
  %vm1915 = vweird.f32 %v1910
  %v1916 = vsel %vm1915, %v1910, %v1914
  %v1917 = vmul.f32 %v1816, %v1916
  %v1918 = vmul.f32 %v1819, %v1916
  %v1919 = vmul.f32 %v1822, %v1916
  %v1920 = vmul.f32 %v1825, %v1916
  %v1921 = vmul.f32 %v1828, %v1916
  %v1922 = vmul.f32 %v1831, %v1916
  %v1923 = vmul.f32 %v1834, %v1916
  %v1924 = vmul.f32 %v1837, %v1916
  %v1925 = vmul.f32 %v1840, %v1916
  %v1926 = vmul.f32 %v1843, %v1916
  %v1927 = vmul.f32 %v1846, %v1916
  %v1928 = vmul.f32 %v1849, %v1916
  %v1929 = vmul.f32 %v1852, %v1916
  %v1930 = vmul.f32 %v1855, %v1916
  %v1931 = vmul.f32 %v1858, %v1916
  %v1932 = vmul.f32 %v1861, %v1916
  %v1933 = vmul.f32 %v1864, %v1916
  %v1934 = vmul.f32 %v1867, %v1916
  %v1935 = vmul.f32 %v1870, %v1916
  %v1936 = vmul.f32 %v1873, %v1916
  %v1937 = vmul.f32 %v1876, %v1916
  %v1938 = vmul.f32 %v1879, %v1916
  %v1939 = vmul.f32 %v1882, %v1916
  %v1940 = vmul.f32 %v1885, %v1916
  %v1941 = vmul.f32 %v1888, %v1916
  %v1942 = vmul.f32 %v1891, %v1916
  %v1943 = vmul.f32 %v1894, %v1916
  %v1944 = vmul.f32 %v1897, %v1916
  %v1945 = vmul.f32 %v1900, %v1916
  %v1946 = vmul.f32 %v1903, %v1916
  %v1947 = vmul.f32 %v1906, %v1916
  %v1948 = vmul.f32 %v1909, %v1916
  %v1949 = vsub.f32 %v1734, %v1917
  %v1950 = vsub.f32 %v1736, %v1918
  %v1951 = vsub.f32 %v1739, %v1919
  %v1952 = vsub.f32 %v1741, %v1920
  %v1953 = vsub.f32 %v1744, %v1921
  %v1954 = vsub.f32 %v1746, %v1922
  %v1955 = vsub.f32 %v1749, %v1923
  %v1956 = vsub.f32 %v1751, %v1924
  %v1957 = vsub.f32 %v1754, %v1925
  %v1958 = vsub.f32 %v1756, %v1926
  %v1959 = vsub.f32 %v1759, %v1927
  %v1960 = vsub.f32 %v1761, %v1928
  %v1961 = vsub.f32 %v1764, %v1929
  %v1962 = vsub.f32 %v1766, %v1930
  %v1963 = vsub.f32 %v1769, %v1931
  %v1964 = vsub.f32 %v1771, %v1932
  %v1965 = vsub.f32 %v1774, %v1933
  %v1966 = vsub.f32 %v1776, %v1934
  %v1967 = vsub.f32 %v1779, %v1935
  %v1968 = vsub.f32 %v1781, %v1936
  %v1969 = vsub.f32 %v1784, %v1937
  %v1970 = vsub.f32 %v1786, %v1938
  %v1971 = vsub.f32 %v1789, %v1939
  %v1972 = vsub.f32 %v1791, %v1940
  %v1973 = vsub.f32 %v1794, %v1941
  %v1974 = vsub.f32 %v1796, %v1942
  %v1975 = vsub.f32 %v1799, %v1943
  %v1976 = vsub.f32 %v1801, %v1944
  %v1977 = vsub.f32 %v1804, %v1945
  %v1978 = vsub.f32 %v1806, %v1946
  %v1979 = vsub.f32 %v1809, %v1947
  %v1980 = vsub.f32 %v1811, %v1948
  %v1981 = vmul.f32 %v1949, %v1949
  %v1982 = vmul.f32 %v1950, %v1950
  %v1983 = vmul.f32 %v1951, %v1951
  %v1984 = vmul.f32 %v1952, %v1952
  %v1985 = vmul.f32 %v1953, %v1953
  %v1986 = vmul.f32 %v1954, %v1954
  %v1987 = vmul.f32 %v1955, %v1955
  %v1988 = vmul.f32 %v1956, %v1956
  %v1989 = vmul.f32 %v1957, %v1957
  %v1990 = vmul.f32 %v1958, %v1958
  %v1991 = vmul.f32 %v1959, %v1959
  %v1992 = vmul.f32 %v1960, %v1960
  %v1993 = vmul.f32 %v1961, %v1961
  %v1994 = vmul.f32 %v1962, %v1962
  %v1995 = vmul.f32 %v1963, %v1963
  %v1996 = vmul.f32 %v1964, %v1964
  %v1997 = vmul.f32 %v1965, %v1965
  %v1998 = vmul.f32 %v1966, %v1966
  %v1999 = vmul.f32 %v1967, %v1967
  %v2000 = vmul.f32 %v1968, %v1968
  %v2001 = vmul.f32 %v1969, %v1969
  %v2002 = vmul.f32 %v1970, %v1970
  %v2003 = vmul.f32 %v1971, %v1971
  %v2004 = vmul.f32 %v1972, %v1972
  %v2005 = vmul.f32 %v1973, %v1973
  %v2006 = vmul.f32 %v1974, %v1974
  %v2007 = vmul.f32 %v1975, %v1975
  %v2008 = vmul.f32 %v1976, %v1976
  %v2009 = vmul.f32 %v1977, %v1977
  %v2010 = vmul.f32 %v1978, %v1978
  %v2011 = vmul.f32 %v1979, %v1979
  %v2012 = vmul.f32 %v1980, %v1980
  %v2013 = vsel %vm1813, %v1981, 0.0
  %2014 = vadd.xlane.f32.xlu0 %v2013
  %v2015 = vpop.xlane.xlu0 %2014
  %v2016 = vsel %vm1813, %v1982, 0.0
  %2017 = vadd.xlane.f32.xlu0 %v2016
  %v2018 = vpop.xlane.xlu0 %2017
  %v2019 = vsel %vm1813, %v1983, 0.0
  %2020 = vadd.xlane.f32.xlu0 %v2019
  %v2021 = vpop.xlane.xlu0 %2020
  %v2022 = vsel %vm1813, %v1984, 0.0
  %2023 = vadd.xlane.f32.xlu0 %v2022
  %v2024 = vpop.xlane.xlu0 %2023
  %v2025 = vsel %vm1813, %v1985, 0.0
  %2026 = vadd.xlane.f32.xlu0 %v2025
  %v2027 = vpop.xlane.xlu0 %2026
  %v2028 = vsel %vm1813, %v1986, 0.0
  %2029 = vadd.xlane.f32.xlu0 %v2028
  %v2030 = vpop.xlane.xlu0 %2029
  %v2031 = vsel %vm1813, %v1987, 0.0
  %2032 = vadd.xlane.f32.xlu0 %v2031
  %v2033 = vpop.xlane.xlu0 %2032
  %v2034 = vsel %vm1813, %v1988, 0.0
  %2035 = vadd.xlane.f32.xlu0 %v2034
  %v2036 = vpop.xlane.xlu0 %2035
  %v2037 = vsel %vm1813, %v1989, 0.0
  %2038 = vadd.xlane.f32.xlu0 %v2037
  %v2039 = vpop.xlane.xlu0 %2038
  %v2040 = vsel %vm1813, %v1990, 0.0
  %2041 = vadd.xlane.f32.xlu0 %v2040
  %v2042 = vpop.xlane.xlu0 %2041
  %v2043 = vsel %vm1813, %v1991, 0.0
  %2044 = vadd.xlane.f32.xlu0 %v2043
  %v2045 = vpop.xlane.xlu0 %2044
  %v2046 = vsel %vm1813, %v1992, 0.0
  %2047 = vadd.xlane.f32.xlu0 %v2046
  %v2048 = vpop.xlane.xlu0 %2047
  %v2049 = vsel %vm1813, %v1993, 0.0
  %2050 = vadd.xlane.f32.xlu0 %v2049
  %v2051 = vpop.xlane.xlu0 %2050
  %v2052 = vsel %vm1813, %v1994, 0.0
  %2053 = vadd.xlane.f32.xlu0 %v2052
  %v2054 = vpop.xlane.xlu0 %2053
  %v2055 = vsel %vm1813, %v1995, 0.0
  %2056 = vadd.xlane.f32.xlu0 %v2055
  %v2057 = vpop.xlane.xlu0 %2056
  %v2058 = vsel %vm1813, %v1996, 0.0
  %2059 = vadd.xlane.f32.xlu0 %v2058
  %v2060 = vpop.xlane.xlu0 %2059
  %v2061 = vsel %vm1813, %v1997, 0.0
  %2062 = vadd.xlane.f32.xlu0 %v2061
  %v2063 = vpop.xlane.xlu0 %2062
  %v2064 = vsel %vm1813, %v1998, 0.0
  %2065 = vadd.xlane.f32.xlu0 %v2064
  %v2066 = vpop.xlane.xlu0 %2065
  %v2067 = vsel %vm1813, %v1999, 0.0
  %2068 = vadd.xlane.f32.xlu0 %v2067
  %v2069 = vpop.xlane.xlu0 %2068
  %v2070 = vsel %vm1813, %v2000, 0.0
  %2071 = vadd.xlane.f32.xlu0 %v2070
  %v2072 = vpop.xlane.xlu0 %2071
  %v2073 = vsel %vm1813, %v2001, 0.0
  %2074 = vadd.xlane.f32.xlu0 %v2073
  %v2075 = vpop.xlane.xlu0 %2074
  %v2076 = vsel %vm1813, %v2002, 0.0
  %2077 = vadd.xlane.f32.xlu0 %v2076
  %v2078 = vpop.xlane.xlu0 %2077
  %v2079 = vsel %vm1813, %v2003, 0.0
  %2080 = vadd.xlane.f32.xlu0 %v2079
  %v2081 = vpop.xlane.xlu0 %2080
  %v2082 = vsel %vm1813, %v2004, 0.0
  %2083 = vadd.xlane.f32.xlu0 %v2082
  %v2084 = vpop.xlane.xlu0 %2083
  %v2085 = vsel %vm1813, %v2005, 0.0
  %2086 = vadd.xlane.f32.xlu0 %v2085
  %v2087 = vpop.xlane.xlu0 %2086
  %v2088 = vsel %vm1813, %v2006, 0.0
  %2089 = vadd.xlane.f32.xlu0 %v2088
  %v2090 = vpop.xlane.xlu0 %2089
  %v2091 = vsel %vm1813, %v2007, 0.0
  %2092 = vadd.xlane.f32.xlu0 %v2091
  %v2093 = vpop.xlane.xlu0 %2092
  %v2094 = vsel %vm1813, %v2008, 0.0
  %2095 = vadd.xlane.f32.xlu0 %v2094
  %v2096 = vpop.xlane.xlu0 %2095
  %v2097 = vsel %vm1813, %v2009, 0.0
  %2098 = vadd.xlane.f32.xlu0 %v2097
  %v2099 = vpop.xlane.xlu0 %2098
  %v2100 = vsel %vm1813, %v2010, 0.0
  %2101 = vadd.xlane.f32.xlu0 %v2100
  %v2102 = vpop.xlane.xlu0 %2101
  %v2103 = vsel %vm1813, %v2011, 0.0
  %2104 = vadd.xlane.f32.xlu0 %v2103
  %v2105 = vpop.xlane.xlu0 %2104
  %v2106 = vsel %vm1813, %v2012, 0.0
  %2107 = vadd.xlane.f32.xlu0 %v2106
  %v2108 = vpop.xlane.xlu0 %2107
  %v2109 = vmul.f32 %v2015, %v1916
  %v2110 = vmul.f32 %v2018, %v1916
  %v2111 = vmul.f32 %v2021, %v1916
  %v2112 = vmul.f32 %v2024, %v1916
  %v2113 = vmul.f32 %v2027, %v1916
  %v2114 = vmul.f32 %v2030, %v1916
  %v2115 = vmul.f32 %v2033, %v1916
  %v2116 = vmul.f32 %v2036, %v1916
  %v2117 = vmul.f32 %v2039, %v1916
  %v2118 = vmul.f32 %v2042, %v1916
  %v2119 = vmul.f32 %v2045, %v1916
  %v2120 = vmul.f32 %v2048, %v1916
  %v2121 = vmul.f32 %v2051, %v1916
  %v2122 = vmul.f32 %v2054, %v1916
  %v2123 = vmul.f32 %v2057, %v1916
  %v2124 = vmul.f32 %v2060, %v1916
  %v2125 = vmul.f32 %v2063, %v1916
  %v2126 = vmul.f32 %v2066, %v1916
  %v2127 = vmul.f32 %v2069, %v1916
  %v2128 = vmul.f32 %v2072, %v1916
  %v2129 = vmul.f32 %v2075, %v1916
  %v2130 = vmul.f32 %v2078, %v1916
  %v2131 = vmul.f32 %v2081, %v1916
  %v2132 = vmul.f32 %v2084, %v1916
  %v2133 = vmul.f32 %v2087, %v1916
  %v2134 = vmul.f32 %v2090, %v1916
  %v2135 = vmul.f32 %v2093, %v1916
  %v2136 = vmul.f32 %v2096, %v1916
  %v2137 = vmul.f32 %v2099, %v1916
  %v2138 = vmul.f32 %v2102, %v1916
  %v2139 = vmul.f32 %v2105, %v1916
  %v2140 = vmul.f32 %v2108, %v1916
  %v2141 = vadd.f32 %v2109, 1e-05
  %v2142 = vadd.f32 %v2110, 1e-05
  %v2143 = vadd.f32 %v2111, 1e-05
  %v2144 = vadd.f32 %v2112, 1e-05
  %v2145 = vadd.f32 %v2113, 1e-05
  %v2146 = vadd.f32 %v2114, 1e-05
  %v2147 = vadd.f32 %v2115, 1e-05
  %v2148 = vadd.f32 %v2116, 1e-05
  %v2149 = vadd.f32 %v2117, 1e-05
  %v2150 = vadd.f32 %v2118, 1e-05
  %v2151 = vadd.f32 %v2119, 1e-05
  %v2152 = vadd.f32 %v2120, 1e-05
  %v2153 = vadd.f32 %v2121, 1e-05
  %v2154 = vadd.f32 %v2122, 1e-05
  %v2155 = vadd.f32 %v2123, 1e-05
  %v2156 = vadd.f32 %v2124, 1e-05
  %v2157 = vadd.f32 %v2125, 1e-05
  %v2158 = vadd.f32 %v2126, 1e-05
  %v2159 = vadd.f32 %v2127, 1e-05
  %v2160 = vadd.f32 %v2128, 1e-05
  %v2161 = vadd.f32 %v2129, 1e-05
  %v2162 = vadd.f32 %v2130, 1e-05
  %v2163 = vadd.f32 %v2131, 1e-05
  %v2164 = vadd.f32 %v2132, 1e-05
  %v2165 = vadd.f32 %v2133, 1e-05
  %v2166 = vadd.f32 %v2134, 1e-05
  %v2167 = vadd.f32 %v2135, 1e-05
  %v2168 = vadd.f32 %v2136, 1e-05
  %v2169 = vadd.f32 %v2137, 1e-05
  %v2170 = vadd.f32 %v2138, 1e-05
  %v2171 = vadd.f32 %v2139, 1e-05
  %v2172 = vadd.f32 %v2140, 1e-05
  %v2173 = vrsqrt.pop %v2141
  %v2174 = vmul.f32 %v2173, %v2141
  %v2175 = vmul.f32 %v2174, %v2173
  %v2176 = vmul.f32 0.5, %v2175
  %v2177 = vsub.f32 1.5, %v2176
  %v2178 = vmul.f32 %v2173, %v2177
  %vm2179 = vweird.f32 %v2141
  %vm2180 = vweird.f32 %v2173
  %vm2181 = vmor %vm2179, %vm2180
  %v2182 = vsel %vm2181, %v2173, %v2178
  %v2183 = vrsqrt.pop %v2142
  %v2184 = vmul.f32 %v2183, %v2142
  %v2185 = vmul.f32 %v2184, %v2183
  %v2186 = vmul.f32 0.5, %v2185
  %v2187 = vsub.f32 1.5, %v2186
  %v2188 = vmul.f32 %v2183, %v2187
  %vm2189 = vweird.f32 %v2142
  %vm2190 = vweird.f32 %v2183
  %vm2191 = vmor %vm2189, %vm2190
  %v2192 = vsel %vm2191, %v2183, %v2188
  %v2193 = vrsqrt.pop %v2143
  %v2194 = vmul.f32 %v2193, %v2143
  %v2195 = vmul.f32 %v2194, %v2193
  %v2196 = vmul.f32 0.5, %v2195
  %v2197 = vsub.f32 1.5, %v2196
  %v2198 = vmul.f32 %v2193, %v2197
  %vm2199 = vweird.f32 %v2143
  %vm2200 = vweird.f32 %v2193
  %vm2201 = vmor %vm2199, %vm2200
  %v2202 = vsel %vm2201, %v2193, %v2198
  %v2203 = vrsqrt.pop %v2144
  %v2204 = vmul.f32 %v2203, %v2144
  %v2205 = vmul.f32 %v2204, %v2203
  %v2206 = vmul.f32 0.5, %v2205
  %v2207 = vsub.f32 1.5, %v2206
  %v2208 = vmul.f32 %v2203, %v2207
  %vm2209 = vweird.f32 %v2144
  %vm2210 = vweird.f32 %v2203
  %vm2211 = vmor %vm2209, %vm2210
  %v2212 = vsel %vm2211, %v2203, %v2208
  %v2213 = vrsqrt.pop %v2145
  %v2214 = vmul.f32 %v2213, %v2145
  %v2215 = vmul.f32 %v2214, %v2213
  %v2216 = vmul.f32 0.5, %v2215
  %v2217 = vsub.f32 1.5, %v2216
  %v2218 = vmul.f32 %v2213, %v2217
  %vm2219 = vweird.f32 %v2145
  %vm2220 = vweird.f32 %v2213
  %vm2221 = vmor %vm2219, %vm2220
  %v2222 = vsel %vm2221, %v2213, %v2218
  %v2223 = vrsqrt.pop %v2146
  %v2224 = vmul.f32 %v2223, %v2146
  %v2225 = vmul.f32 %v2224, %v2223
  %v2226 = vmul.f32 0.5, %v2225
  %v2227 = vsub.f32 1.5, %v2226
  %v2228 = vmul.f32 %v2223, %v2227
  %vm2229 = vweird.f32 %v2146
  %vm2230 = vweird.f32 %v2223
  %vm2231 = vmor %vm2229, %vm2230
  %v2232 = vsel %vm2231, %v2223, %v2228
  %v2233 = vrsqrt.pop %v2147
  %v2234 = vmul.f32 %v2233, %v2147
  %v2235 = vmul.f32 %v2234, %v2233
  %v2236 = vmul.f32 0.5, %v2235
  %v2237 = vsub.f32 1.5, %v2236
  %v2238 = vmul.f32 %v2233, %v2237
  %vm2239 = vweird.f32 %v2147
  %vm2240 = vweird.f32 %v2233
  %vm2241 = vmor %vm2239, %vm2240
  %v2242 = vsel %vm2241, %v2233, %v2238
  %v2243 = vrsqrt.pop %v2148
  %v2244 = vmul.f32 %v2243, %v2148
  %v2245 = vmul.f32 %v2244, %v2243
  %v2246 = vmul.f32 0.5, %v2245
  %v2247 = vsub.f32 1.5, %v2246
  %v2248 = vmul.f32 %v2243, %v2247
  %vm2249 = vweird.f32 %v2148
  %vm2250 = vweird.f32 %v2243
  %vm2251 = vmor %vm2249, %vm2250
  %v2252 = vsel %vm2251, %v2243, %v2248
  %v2253 = vrsqrt.pop %v2149
  %v2254 = vmul.f32 %v2253, %v2149
  %v2255 = vmul.f32 %v2254, %v2253
  %v2256 = vmul.f32 0.5, %v2255
  %v2257 = vsub.f32 1.5, %v2256
  %v2258 = vmul.f32 %v2253, %v2257
  %vm2259 = vweird.f32 %v2149
  %vm2260 = vweird.f32 %v2253
  %vm2261 = vmor %vm2259, %vm2260
  %v2262 = vsel %vm2261, %v2253, %v2258
  %v2263 = vrsqrt.pop %v2150
  %v2264 = vmul.f32 %v2263, %v2150
  %v2265 = vmul.f32 %v2264, %v2263
  %v2266 = vmul.f32 0.5, %v2265
  %v2267 = vsub.f32 1.5, %v2266
  %v2268 = vmul.f32 %v2263, %v2267
  %vm2269 = vweird.f32 %v2150
  %vm2270 = vweird.f32 %v2263
  %vm2271 = vmor %vm2269, %vm2270
  %v2272 = vsel %vm2271, %v2263, %v2268
  %v2273 = vrsqrt.pop %v2151
  %v2274 = vmul.f32 %v2273, %v2151
  %v2275 = vmul.f32 %v2274, %v2273
  %v2276 = vmul.f32 0.5, %v2275
  %v2277 = vsub.f32 1.5, %v2276
  %v2278 = vmul.f32 %v2273, %v2277
  %vm2279 = vweird.f32 %v2151
  %vm2280 = vweird.f32 %v2273
  %vm2281 = vmor %vm2279, %vm2280
  %v2282 = vsel %vm2281, %v2273, %v2278
  %v2283 = vrsqrt.pop %v2152
  %v2284 = vmul.f32 %v2283, %v2152
  %v2285 = vmul.f32 %v2284, %v2283
  %v2286 = vmul.f32 0.5, %v2285
  %v2287 = vsub.f32 1.5, %v2286
  %v2288 = vmul.f32 %v2283, %v2287
  %vm2289 = vweird.f32 %v2152
  %vm2290 = vweird.f32 %v2283
  %vm2291 = vmor %vm2289, %vm2290
  %v2292 = vsel %vm2291, %v2283, %v2288
  %v2293 = vrsqrt.pop %v2153
  %v2294 = vmul.f32 %v2293, %v2153
  %v2295 = vmul.f32 %v2294, %v2293
  %v2296 = vmul.f32 0.5, %v2295
  %v2297 = vsub.f32 1.5, %v2296
  %v2298 = vmul.f32 %v2293, %v2297
  %vm2299 = vweird.f32 %v2153
  %vm2300 = vweird.f32 %v2293
  %vm2301 = vmor %vm2299, %vm2300
  %v2302 = vsel %vm2301, %v2293, %v2298
  %v2303 = vrsqrt.pop %v2154
  %v2304 = vmul.f32 %v2303, %v2154
  %v2305 = vmul.f32 %v2304, %v2303
  %v2306 = vmul.f32 0.5, %v2305
  %v2307 = vsub.f32 1.5, %v2306
  %v2308 = vmul.f32 %v2303, %v2307
  %vm2309 = vweird.f32 %v2154
  %vm2310 = vweird.f32 %v2303
  %vm2311 = vmor %vm2309, %vm2310
  %v2312 = vsel %vm2311, %v2303, %v2308
  %v2313 = vrsqrt.pop %v2155
  %v2314 = vmul.f32 %v2313, %v2155
  %v2315 = vmul.f32 %v2314, %v2313
  %v2316 = vmul.f32 0.5, %v2315
  %v2317 = vsub.f32 1.5, %v2316
  %v2318 = vmul.f32 %v2313, %v2317
  %vm2319 = vweird.f32 %v2155
  %vm2320 = vweird.f32 %v2313
  %vm2321 = vmor %vm2319, %vm2320
  %v2322 = vsel %vm2321, %v2313, %v2318
  %v2323 = vrsqrt.pop %v2156
  %v2324 = vmul.f32 %v2323, %v2156
  %v2325 = vmul.f32 %v2324, %v2323
  %v2326 = vmul.f32 0.5, %v2325
  %v2327 = vsub.f32 1.5, %v2326
  %v2328 = vmul.f32 %v2323, %v2327
  %vm2329 = vweird.f32 %v2156
  %vm2330 = vweird.f32 %v2323
  %vm2331 = vmor %vm2329, %vm2330
  %v2332 = vsel %vm2331, %v2323, %v2328
  %v2333 = vrsqrt.pop %v2157
  %v2334 = vmul.f32 %v2333, %v2157
  %v2335 = vmul.f32 %v2334, %v2333
  %v2336 = vmul.f32 0.5, %v2335
  %v2337 = vsub.f32 1.5, %v2336
  %v2338 = vmul.f32 %v2333, %v2337
  %vm2339 = vweird.f32 %v2157
  %vm2340 = vweird.f32 %v2333
  %vm2341 = vmor %vm2339, %vm2340
  %v2342 = vsel %vm2341, %v2333, %v2338
  %v2343 = vrsqrt.pop %v2158
  %v2344 = vmul.f32 %v2343, %v2158
  %v2345 = vmul.f32 %v2344, %v2343
  %v2346 = vmul.f32 0.5, %v2345
  %v2347 = vsub.f32 1.5, %v2346
  %v2348 = vmul.f32 %v2343, %v2347
  %vm2349 = vweird.f32 %v2158
  %vm2350 = vweird.f32 %v2343
  %vm2351 = vmor %vm2349, %vm2350
  %v2352 = vsel %vm2351, %v2343, %v2348
  %v2353 = vrsqrt.pop %v2159
  %v2354 = vmul.f32 %v2353, %v2159
  %v2355 = vmul.f32 %v2354, %v2353
  %v2356 = vmul.f32 0.5, %v2355
  %v2357 = vsub.f32 1.5, %v2356
  %v2358 = vmul.f32 %v2353, %v2357
  %vm2359 = vweird.f32 %v2159
  %vm2360 = vweird.f32 %v2353
  %vm2361 = vmor %vm2359, %vm2360
  %v2362 = vsel %vm2361, %v2353, %v2358
  %v2363 = vrsqrt.pop %v2160
  %v2364 = vmul.f32 %v2363, %v2160
  %v2365 = vmul.f32 %v2364, %v2363
  %v2366 = vmul.f32 0.5, %v2365
  %v2367 = vsub.f32 1.5, %v2366
  %v2368 = vmul.f32 %v2363, %v2367
  %vm2369 = vweird.f32 %v2160
  %vm2370 = vweird.f32 %v2363
  %vm2371 = vmor %vm2369, %vm2370
  %v2372 = vsel %vm2371, %v2363, %v2368
  %v2373 = vrsqrt.pop %v2161
  %v2374 = vmul.f32 %v2373, %v2161
  %v2375 = vmul.f32 %v2374, %v2373
  %v2376 = vmul.f32 0.5, %v2375
  %v2377 = vsub.f32 1.5, %v2376
  %v2378 = vmul.f32 %v2373, %v2377
  %vm2379 = vweird.f32 %v2161
  %vm2380 = vweird.f32 %v2373
  %vm2381 = vmor %vm2379, %vm2380
  %v2382 = vsel %vm2381, %v2373, %v2378
  %v2383 = vrsqrt.pop %v2162
  %v2384 = vmul.f32 %v2383, %v2162
  %v2385 = vmul.f32 %v2384, %v2383
  %v2386 = vmul.f32 0.5, %v2385
  %v2387 = vsub.f32 1.5, %v2386
  %v2388 = vmul.f32 %v2383, %v2387
  %vm2389 = vweird.f32 %v2162
  %vm2390 = vweird.f32 %v2383
  %vm2391 = vmor %vm2389, %vm2390
  %v2392 = vsel %vm2391, %v2383, %v2388
  %v2393 = vrsqrt.pop %v2163
  %v2394 = vmul.f32 %v2393, %v2163
  %v2395 = vmul.f32 %v2394, %v2393
  %v2396 = vmul.f32 0.5, %v2395
  %v2397 = vsub.f32 1.5, %v2396
  %v2398 = vmul.f32 %v2393, %v2397
  %vm2399 = vweird.f32 %v2163
  %vm2400 = vweird.f32 %v2393
  %vm2401 = vmor %vm2399, %vm2400
  %v2402 = vsel %vm2401, %v2393, %v2398
  %v2403 = vrsqrt.pop %v2164
  %v2404 = vmul.f32 %v2403, %v2164
  %v2405 = vmul.f32 %v2404, %v2403
  %v2406 = vmul.f32 0.5, %v2405
  %v2407 = vsub.f32 1.5, %v2406
  %v2408 = vmul.f32 %v2403, %v2407
  %vm2409 = vweird.f32 %v2164
  %vm2410 = vweird.f32 %v2403
  %vm2411 = vmor %vm2409, %vm2410
  %v2412 = vsel %vm2411, %v2403, %v2408
  %v2413 = vrsqrt.pop %v2165
  %v2414 = vmul.f32 %v2413, %v2165
  %v2415 = vmul.f32 %v2414, %v2413
  %v2416 = vmul.f32 0.5, %v2415
  %v2417 = vsub.f32 1.5, %v2416
  %v2418 = vmul.f32 %v2413, %v2417
  %vm2419 = vweird.f32 %v2165
  %vm2420 = vweird.f32 %v2413
  %vm2421 = vmor %vm2419, %vm2420
  %v2422 = vsel %vm2421, %v2413, %v2418
  %v2423 = vrsqrt.pop %v2166
  %v2424 = vmul.f32 %v2423, %v2166
  %v2425 = vmul.f32 %v2424, %v2423
  %v2426 = vmul.f32 0.5, %v2425
  %v2427 = vsub.f32 1.5, %v2426
  %v2428 = vmul.f32 %v2423, %v2427
  %vm2429 = vweird.f32 %v2166
  %vm2430 = vweird.f32 %v2423
  %vm2431 = vmor %vm2429, %vm2430
  %v2432 = vsel %vm2431, %v2423, %v2428
  %v2433 = vrsqrt.pop %v2167
  %v2434 = vmul.f32 %v2433, %v2167
  %v2435 = vmul.f32 %v2434, %v2433
  %v2436 = vmul.f32 0.5, %v2435
  %v2437 = vsub.f32 1.5, %v2436
  %v2438 = vmul.f32 %v2433, %v2437
  %vm2439 = vweird.f32 %v2167
  %vm2440 = vweird.f32 %v2433
  %vm2441 = vmor %vm2439, %vm2440
  %v2442 = vsel %vm2441, %v2433, %v2438
  %v2443 = vrsqrt.pop %v2168
  %v2444 = vmul.f32 %v2443, %v2168
  %v2445 = vmul.f32 %v2444, %v2443
  %v2446 = vmul.f32 0.5, %v2445
  %v2447 = vsub.f32 1.5, %v2446
  %v2448 = vmul.f32 %v2443, %v2447
  %vm2449 = vweird.f32 %v2168
  %vm2450 = vweird.f32 %v2443
  %vm2451 = vmor %vm2449, %vm2450
  %v2452 = vsel %vm2451, %v2443, %v2448
  %v2453 = vrsqrt.pop %v2169
  %v2454 = vmul.f32 %v2453, %v2169
  %v2455 = vmul.f32 %v2454, %v2453
  %v2456 = vmul.f32 0.5, %v2455
  %v2457 = vsub.f32 1.5, %v2456
  %v2458 = vmul.f32 %v2453, %v2457
  %vm2459 = vweird.f32 %v2169
  %vm2460 = vweird.f32 %v2453
  %vm2461 = vmor %vm2459, %vm2460
  %v2462 = vsel %vm2461, %v2453, %v2458
  %v2463 = vrsqrt.pop %v2170
  %v2464 = vmul.f32 %v2463, %v2170
  %v2465 = vmul.f32 %v2464, %v2463
  %v2466 = vmul.f32 0.5, %v2465
  %v2467 = vsub.f32 1.5, %v2466
  %v2468 = vmul.f32 %v2463, %v2467
  %vm2469 = vweird.f32 %v2170
  %vm2470 = vweird.f32 %v2463
  %vm2471 = vmor %vm2469, %vm2470
  %v2472 = vsel %vm2471, %v2463, %v2468
  %v2473 = vrsqrt.pop %v2171
  %v2474 = vmul.f32 %v2473, %v2171
  %v2475 = vmul.f32 %v2474, %v2473
  %v2476 = vmul.f32 0.5, %v2475
  %v2477 = vsub.f32 1.5, %v2476
  %v2478 = vmul.f32 %v2473, %v2477
  %vm2479 = vweird.f32 %v2171
  %vm2480 = vweird.f32 %v2473
  %vm2481 = vmor %vm2479, %vm2480
  %v2482 = vsel %vm2481, %v2473, %v2478
  %v2483 = vrsqrt.pop %v2172
  %v2484 = vmul.f32 %v2483, %v2172
  %v2485 = vmul.f32 %v2484, %v2483
  %v2486 = vmul.f32 0.5, %v2485
  %v2487 = vsub.f32 1.5, %v2486
  %v2488 = vmul.f32 %v2483, %v2487
  %vm2489 = vweird.f32 %v2172
  %vm2490 = vweird.f32 %v2483
  %vm2491 = vmor %vm2489, %vm2490
  %v2492 = vsel %vm2491, %v2483, %v2488
  %v2493 = vmul.f32 %v1949, %v2182
  %v2494 = vmul.f32 %v1950, %v2192
  %v2495 = vmul.f32 %v1951, %v2202
  %v2496 = vmul.f32 %v1952, %v2212
  %v2497 = vmul.f32 %v1953, %v2222
  %v2498 = vmul.f32 %v1954, %v2232
  %v2499 = vmul.f32 %v1955, %v2242
  %v2500 = vmul.f32 %v1956, %v2252
  %v2501 = vmul.f32 %v1957, %v2262
  %v2502 = vmul.f32 %v1958, %v2272
  %v2503 = vmul.f32 %v1959, %v2282
  %v2504 = vmul.f32 %v1960, %v2292
  %v2505 = vmul.f32 %v1961, %v2302
  %v2506 = vmul.f32 %v1962, %v2312
  %v2507 = vmul.f32 %v1963, %v2322
  %v2508 = vmul.f32 %v1964, %v2332
  %v2509 = vmul.f32 %v1965, %v2342
  %v2510 = vmul.f32 %v1966, %v2352
  %v2511 = vmul.f32 %v1967, %v2362
  %v2512 = vmul.f32 %v1968, %v2372
  %v2513 = vmul.f32 %v1969, %v2382
  %v2514 = vmul.f32 %v1970, %v2392
  %v2515 = vmul.f32 %v1971, %v2402
  %v2516 = vmul.f32 %v1972, %v2412
  %v2517 = vmul.f32 %v1973, %v2422
  %v2518 = vmul.f32 %v1974, %v2432
  %v2519 = vmul.f32 %v1975, %v2442
  %v2520 = vmul.f32 %v1976, %v2452
  %v2521 = vmul.f32 %v1977, %v2462
  %v2522 = vmul.f32 %v1978, %v2472
  %v2523 = vmul.f32 %v1979, %v2482
  %v2524 = vmul.f32 %v1980, %v2492
  %v2525 = vld [vmem:[%s3] sm:$0x1]
  %v2527 = vperm.slane %v2525, 0
  %v2529 = vmul.f32 %v2493, %v2527
  %v2530 = vmul.f32 %v2494, %v2527
  %v2531 = vmul.f32 %v2495, %v2527
  %v2532 = vmul.f32 %v2496, %v2527
  %v2533 = vmul.f32 %v2497, %v2527
  %v2534 = vmul.f32 %v2498, %v2527
  %v2535 = vmul.f32 %v2499, %v2527
  %v2536 = vmul.f32 %v2500, %v2527
  %v2537 = vmul.f32 %v2501, %v2527
  %v2538 = vmul.f32 %v2502, %v2527
  %v2539 = vmul.f32 %v2503, %v2527
  %v2540 = vmul.f32 %v2504, %v2527
  %v2541 = vmul.f32 %v2505, %v2527
  %v2542 = vmul.f32 %v2506, %v2527
  %v2543 = vmul.f32 %v2507, %v2527
  %v2544 = vmul.f32 %v2508, %v2527
  %v2545 = vmul.f32 %v2509, %v2527
  %v2546 = vmul.f32 %v2510, %v2527
  %v2547 = vmul.f32 %v2511, %v2527
  %v2548 = vmul.f32 %v2512, %v2527
  %v2549 = vmul.f32 %v2513, %v2527
  %v2550 = vmul.f32 %v2514, %v2527
  %v2551 = vmul.f32 %v2515, %v2527
  %v2552 = vmul.f32 %v2516, %v2527
  %v2553 = vmul.f32 %v2517, %v2527
  %v2554 = vmul.f32 %v2518, %v2527
  %v2555 = vmul.f32 %v2519, %v2527
  %v2556 = vmul.f32 %v2520, %v2527
  %v2557 = vmul.f32 %v2521, %v2527
  %v2558 = vmul.f32 %v2522, %v2527
  %v2559 = vmul.f32 %v2523, %v2527
  %v2560 = vmul.f32 %v2524, %v2527
  %v2561 = vld [vmem:[%s4] sm:$0x1]
  %v2563 = vperm.slane %v2561, 0
  %v2565 = vadd.f32 %v2529, %v2563
  %v2566 = vadd.f32 %v2530, %v2563
  %v2567 = vadd.f32 %v2531, %v2563
  %v2568 = vadd.f32 %v2532, %v2563
  %v2569 = vadd.f32 %v2533, %v2563
  %v2570 = vadd.f32 %v2534, %v2563
  %v2571 = vadd.f32 %v2535, %v2563
  %v2572 = vadd.f32 %v2536, %v2563
  %v2573 = vadd.f32 %v2537, %v2563
  %v2574 = vadd.f32 %v2538, %v2563
  %v2575 = vadd.f32 %v2539, %v2563
  %v2576 = vadd.f32 %v2540, %v2563
  %v2577 = vadd.f32 %v2541, %v2563
  %v2578 = vadd.f32 %v2542, %v2563
  %v2579 = vadd.f32 %v2543, %v2563
  %v2580 = vadd.f32 %v2544, %v2563
  %v2581 = vadd.f32 %v2545, %v2563
  %v2582 = vadd.f32 %v2546, %v2563
  %v2583 = vadd.f32 %v2547, %v2563
  %v2584 = vadd.f32 %v2548, %v2563
  %v2585 = vadd.f32 %v2549, %v2563
  %v2586 = vadd.f32 %v2550, %v2563
  %v2587 = vadd.f32 %v2551, %v2563
  %v2588 = vadd.f32 %v2552, %v2563
  %v2589 = vadd.f32 %v2553, %v2563
  %v2590 = vadd.f32 %v2554, %v2563
  %v2591 = vadd.f32 %v2555, %v2563
  %v2592 = vadd.f32 %v2556, %v2563
  %v2593 = vadd.f32 %v2557, %v2563
  %v2594 = vadd.f32 %v2558, %v2563
  %v2595 = vadd.f32 %v2559, %v2563
  %v2596 = vadd.f32 %v2560, %v2563
  %v2597 = vld [vmem:[%s1] sm:$0xff]
  %v2598 = vld [vmem:[%s1 + $0x8] sm:$0xff]
  %v2599 = vld [vmem:[%s1 + $0x10] sm:$0xff]
  %v2600 = vld [vmem:[%s1 + $0x18] sm:$0xff]
  %v2601 = vld [vmem:[%s1 + $0x20] sm:$0xff]
  %v2602 = vld [vmem:[%s1 + $0x28] sm:$0xff]
  %v2603 = vld [vmem:[%s1 + $0x30] sm:$0xff]
  %v2604 = vld [vmem:[%s1 + $0x38] sm:$0xff]
  %v2605 = vld [vmem:[%s1 + $0x40] sm:$0xff]
  %v2606 = vld [vmem:[%s1 + $0x48] sm:$0xff]
  %v2607 = vld [vmem:[%s1 + $0x50] sm:$0xff]
  %v2608 = vld [vmem:[%s1 + $0x58] sm:$0xff]
  %v2609 = vld [vmem:[%s1 + $0x60] sm:$0xff]
  %v2610 = vld [vmem:[%s1 + $0x68] sm:$0xff]
  %v2611 = vld [vmem:[%s1 + $0x70] sm:$0xff]
  %v2612 = vld [vmem:[%s1 + $0x78] sm:$0xff]
  %v2613 = vld [vmem:[%s1 + $0x80] sm:$0xff]
  %v2614 = vld [vmem:[%s1 + $0x88] sm:$0xff]
  %v2615 = vld [vmem:[%s1 + $0x90] sm:$0xff]
  %v2616 = vld [vmem:[%s1 + $0x98] sm:$0xff]
  %v2617 = vld [vmem:[%s1 + $0xa0] sm:$0xff]
  %v2618 = vld [vmem:[%s1 + $0xa8] sm:$0xff]
  %v2619 = vld [vmem:[%s1 + $0xb0] sm:$0xff]
  %v2620 = vld [vmem:[%s1 + $0xb8] sm:$0xff]
  %v2621 = vld [vmem:[%s1 + $0xc0] sm:$0xff]
  %v2622 = vld [vmem:[%s1 + $0xc8] sm:$0xff]
  %v2623 = vld [vmem:[%s1 + $0xd0] sm:$0xff]
  %v2624 = vld [vmem:[%s1 + $0xd8] sm:$0xff]
  %v2625 = vld [vmem:[%s1 + $0xe0] sm:$0xff]
  %v2626 = vld [vmem:[%s1 + $0xe8] sm:$0xff]
  %v2627 = vld [vmem:[%s1 + $0xf0] sm:$0xff]
  %v2628 = vld [vmem:[%s1 + $0xf8] sm:$0xff]
  %v2629 = vadd.f32 %v2565, %v2597
  %v2630 = vadd.f32 %v2566, %v2598
  %v2631 = vadd.f32 %v2567, %v2599
  %v2632 = vadd.f32 %v2568, %v2600
  %v2633 = vadd.f32 %v2569, %v2601
  %v2634 = vadd.f32 %v2570, %v2602
  %v2635 = vadd.f32 %v2571, %v2603
  %v2636 = vadd.f32 %v2572, %v2604
  %v2637 = vadd.f32 %v2573, %v2605
  %v2638 = vadd.f32 %v2574, %v2606
  %v2639 = vadd.f32 %v2575, %v2607
  %v2640 = vadd.f32 %v2576, %v2608
  %v2641 = vadd.f32 %v2577, %v2609
  %v2642 = vadd.f32 %v2578, %v2610
  %v2643 = vadd.f32 %v2579, %v2611
  %v2644 = vadd.f32 %v2580, %v2612
  %v2645 = vadd.f32 %v2581, %v2613
  %v2646 = vadd.f32 %v2582, %v2614
  %v2647 = vadd.f32 %v2583, %v2615
  %v2648 = vadd.f32 %v2584, %v2616
  %v2649 = vadd.f32 %v2585, %v2617
  %v2650 = vadd.f32 %v2586, %v2618
  %v2651 = vadd.f32 %v2587, %v2619
  %v2652 = vadd.f32 %v2588, %v2620
  %v2653 = vadd.f32 %v2589, %v2621
  %v2654 = vadd.f32 %v2590, %v2622
  %v2655 = vadd.f32 %v2591, %v2623
  %v2656 = vadd.f32 %v2592, %v2624
  %v2657 = vadd.f32 %v2593, %v2625
  %v2658 = vadd.f32 %v2594, %v2626
  %v2659 = vadd.f32 %v2595, %v2627
  %v2660 = vadd.f32 %v2596, %v2628
  %v2661 = vmax.f32 %v2629, 0.0
  %v2662 = vmax.f32 %v2630, 0.0
  %v2663 = vmax.f32 %v2631, 0.0
  %v2664 = vmax.f32 %v2632, 0.0
  %v2665 = vmax.f32 %v2633, 0.0
  %v2666 = vmax.f32 %v2634, 0.0
  %v2667 = vmax.f32 %v2635, 0.0
  %v2668 = vmax.f32 %v2636, 0.0
  %v2669 = vmax.f32 %v2637, 0.0
  %v2670 = vmax.f32 %v2638, 0.0
  %v2671 = vmax.f32 %v2639, 0.0
  %v2672 = vmax.f32 %v2640, 0.0
  %v2673 = vmax.f32 %v2641, 0.0
  %v2674 = vmax.f32 %v2642, 0.0
  %v2675 = vmax.f32 %v2643, 0.0
  %v2676 = vmax.f32 %v2644, 0.0
  %v2677 = vmax.f32 %v2645, 0.0
  %v2678 = vmax.f32 %v2646, 0.0
  %v2679 = vmax.f32 %v2647, 0.0
  %v2680 = vmax.f32 %v2648, 0.0
  %v2681 = vmax.f32 %v2649, 0.0
  %v2682 = vmax.f32 %v2650, 0.0
  %v2683 = vmax.f32 %v2651, 0.0
  %v2684 = vmax.f32 %v2652, 0.0
  %v2685 = vmax.f32 %v2653, 0.0
  %v2686 = vmax.f32 %v2654, 0.0
  %v2687 = vmax.f32 %v2655, 0.0
  %v2688 = vmax.f32 %v2656, 0.0
  %v2689 = vmax.f32 %v2657, 0.0
  %v2690 = vmax.f32 %v2658, 0.0
  %v2691 = vmax.f32 %v2659, 0.0
  %v2692 = vmax.f32 %v2660, 0.0
  %2693 = vst.msk [vmem:[%s5] sm:$0xff] %vm1813, %v2661
  %2694 = vst.msk [vmem:[%s5 + $0x8] sm:$0xff] %vm1813, %v2662
  %2695 = vst.msk [vmem:[%s5 + $0x10] sm:$0xff] %vm1813, %v2663
  %2696 = vst.msk [vmem:[%s5 + $0x18] sm:$0xff] %vm1813, %v2664
  %2697 = vst.msk [vmem:[%s5 + $0x20] sm:$0xff] %vm1813, %v2665
  %2698 = vst.msk [vmem:[%s5 + $0x28] sm:$0xff] %vm1813, %v2666
  %2699 = vst.msk [vmem:[%s5 + $0x30] sm:$0xff] %vm1813, %v2667
  %2700 = vst.msk [vmem:[%s5 + $0x38] sm:$0xff] %vm1813, %v2668
  %2701 = vst.msk [vmem:[%s5 + $0x40] sm:$0xff] %vm1813, %v2669
  %2702 = vst.msk [vmem:[%s5 + $0x48] sm:$0xff] %vm1813, %v2670
  %2703 = vst.msk [vmem:[%s5 + $0x50] sm:$0xff] %vm1813, %v2671
  %2704 = vst.msk [vmem:[%s5 + $0x58] sm:$0xff] %vm1813, %v2672
  %2705 = vst.msk [vmem:[%s5 + $0x60] sm:$0xff] %vm1813, %v2673
  %2706 = vst.msk [vmem:[%s5 + $0x68] sm:$0xff] %vm1813, %v2674
  %2707 = vst.msk [vmem:[%s5 + $0x70] sm:$0xff] %vm1813, %v2675
  %2708 = vst.msk [vmem:[%s5 + $0x78] sm:$0xff] %vm1813, %v2676
  %2709 = vst.msk [vmem:[%s5 + $0x80] sm:$0xff] %vm1813, %v2677
  %2710 = vst.msk [vmem:[%s5 + $0x88] sm:$0xff] %vm1813, %v2678
  %2711 = vst.msk [vmem:[%s5 + $0x90] sm:$0xff] %vm1813, %v2679
  %2712 = vst.msk [vmem:[%s5 + $0x98] sm:$0xff] %vm1813, %v2680
  %2713 = vst.msk [vmem:[%s5 + $0xa0] sm:$0xff] %vm1813, %v2681
  %2714 = vst.msk [vmem:[%s5 + $0xa8] sm:$0xff] %vm1813, %v2682
  %2715 = vst.msk [vmem:[%s5 + $0xb0] sm:$0xff] %vm1813, %v2683
  %2716 = vst.msk [vmem:[%s5 + $0xb8] sm:$0xff] %vm1813, %v2684
  %2717 = vst.msk [vmem:[%s5 + $0xc0] sm:$0xff] %vm1813, %v2685
  %2718 = vst.msk [vmem:[%s5 + $0xc8] sm:$0xff] %vm1813, %v2686
  %2719 = vst.msk [vmem:[%s5 + $0xd0] sm:$0xff] %vm1813, %v2687
  %2720 = vst.msk [vmem:[%s5 + $0xd8] sm:$0xff] %vm1813, %v2688
  %2721 = vst.msk [vmem:[%s5 + $0xe0] sm:$0xff] %vm1813, %v2689
  %2722 = vst.msk [vmem:[%s5 + $0xe8] sm:$0xff] %vm1813, %v2690
  %2723 = vst.msk [vmem:[%s5 + $0xf0] sm:$0xff] %vm1813, %v2691
  %2724 = vst.msk [vmem:[%s5 + $0xf8] sm:$0xff] %vm1813, %v2692
  // Predicated region
  $region22: #{tpu_custom_call.1} parent=0 // pred_check
    _
  $region23: #{tpu_custom_call.1} parent=0 // pred_check_branch
    %2726 = sbr.rel (0) target = $region25
  $region24: #{tpu_custom_call.1} parent=0 // pred_region
    _
  $region25: #{tpu_custom_call.1} parent=0 // pred_fallthru
    _
  // Predicated region
  $region26: #{tpu_custom_call.1} parent=0 // pred_check
    _
  $region27: #{tpu_custom_call.1} parent=0 // pred_check_branch
    %2728 = sbr.rel (0) target = $region29
  $region28: #{tpu_custom_call.1} parent=0 // pred_region
    _
  $region29: #{tpu_custom_call.1} parent=0 // pred_fallthru
    _

</llo_original>
